<compile_context>
chip_gen: v7x
topology: tpu7x:2x2x1
jax: 0.10.0
libtpu: 0.0.40
codegen_flags: <defaults>
</compile_context>

<pallas_src>
import jax
import jax.numpy as jnp
from jax.experimental import pallas as pl
from jax.experimental.pallas import tpu as pltpu

LEAKY_SLOPE = 0.01  # nn.LeakyReLU default negative_slope


def mlp_kernel(x_ref,
               w1t_ref, b1_ref,
               w2_ref, w3_ref, w4_ref, bcat_ref,
               w5_ref, b5_ref,
               o_ref):
    """Whole 5-layer MLP for one batch tile.

    x_ref    : (T, in)          f32/bf16  activations, batch on sublanes
    w1t_ref  : (in, hs1)        bf16      layer-1 weight, pre-transposed
    b1_ref   : (1, hs1)         f32
    w2..w4   : (out, in)        bf16      PyTorch-shaped (used as MXU LHS)
    bcat_ref : (hs2+hs3+hs4, 1) f32       b2|b3|b4 stacked as a column
    w5_ref   : (1, hs4)         bf16
    b5_ref   : (1, 1)           f32       scalar in SMEM
    o_ref    : (1, T)           f32       lane-dense output (batch on lanes)
    """
    f32, bf16 = jnp.float32, jnp.bfloat16

    # ---- Layer 1: standard orientation (batch on sublanes), in-kernel bf16 cast.
    x = x_ref[...].astype(bf16)                                    # (T, in)
    h = jnp.dot(x, w1t_ref[...], preferred_element_type=f32)       # (T, hs1)
    h = h + b1_ref[...]
    h = jnp.where(h > 0, h, LEAKY_SLOPE * h).astype(bf16)

    # ---- Single transpose: put the batch on the lane axis for the narrow layers.
    hT = h.T                                                       # (hs1, T)

    hs2 = w2_ref.shape[0]
    hs3 = w3_ref.shape[0]
    hs4 = w4_ref.shape[0]
    b2 = bcat_ref[0:hs2, :]                                        # (hs2, 1)
    b3 = bcat_ref[hs2:hs2 + hs3, :]                                # (hs3, 1)
    b4 = bcat_ref[hs2 + hs3:hs2 + hs3 + hs4, :]                    # (hs4, 1)

    def layer_t(w_ref, h_t, b_col):
        # h_{k+1}^T = leaky(W_k . h_k^T + b_k)
        acc = jnp.dot(w_ref[...], h_t, preferred_element_type=f32)  # (out, T)
        acc = acc + b_col                                           # broadcast over lanes
        acc = jnp.where(acc > 0, acc, LEAKY_SLOPE * acc)            # LeakyReLU in f32
        return acc.astype(bf16)

    hT = layer_t(w2_ref, hT, b2)
    hT = layer_t(w3_ref, hT, b3)
    hT = layer_t(w4_ref, hT, b4)

    # ---- Layer 5: (1, hs4) . (hs4, T) -> (1, T); already lane-dense.
    out = jnp.dot(w5_ref[...], hT, preferred_element_type=f32)
    out = out + b5_ref[0, 0]
    o_ref[...] = out.astype(o_ref.dtype)


def _round_up(x, m):
    return ((x + m - 1) // m) * m


def _choose_batch_tile(B):
    """Pick a batch tile: big enough to amortise per-step cost, even grid for v7x."""
    b8 = _round_up(max(B, 1), 8)
    if b8 <= 1024:
        return b8                       # whole batch in one tile
    cap = 2048 if b8 >= 8 * 2048 else 1024
    n = -(-b8 // cap)                   # ceil-div: number of grid steps
    if n % 2:                           # even grid: both v7x TensorCores stay busy
        n += 1
    if b8 >= 4 * 512 and n < 4:         # >=4 steps so each core still double-buffers
        n = 4
    return _round_up(-(-b8 // n), 8)


def ann_forward(x, params, *, batch_tile=None):
    """x: (B, input_size) f32 (or bf16). params: PyTorch-shaped weights/biases."""
    B, in_size = x.shape

    tile = _choose_batch_tile(B) if batch_tile is None else max(8, _round_up(batch_tile, 8))

    # Pad batch only when needed (padded rows sliced off below).
    b_pad = _round_up(B, tile)
    if b_pad != B:
        x = jnp.pad(x, ((0, b_pad - B), (0, 0)))
    num_tiles = b_pad // tile

    bf16, f32 = jnp.bfloat16, jnp.float32

    # Weights/biases are tiny -> one-time casts. x is fed through untouched.
    w1t = params["w1"].T.astype(bf16)          # (in, hs1): layer 1 runs batch-on-sublanes
    w2 = params["w2"].astype(bf16)             # (hs2, hs1): PyTorch-shaped, no transpose
    w3 = params["w3"].astype(bf16)             # (hs3, hs2)
    w4 = params["w4"].astype(bf16)             # (hs4, hs3)
    w5 = params["w5"].astype(bf16)             # (1, hs4)
    b1 = params["b1"][None, :].astype(f32)     # (1, hs1)
    bcat = jnp.concatenate(
        [params["b2"], params["b3"], params["b4"]]).astype(f32)[:, None]  # (hs2+hs3+hs4, 1)
    b5 = params["b5"].reshape(1, 1).astype(f32)

    full = lambda a: pl.BlockSpec(a.shape, lambda i: (0, 0))

    # Explicit VMEM budget: double-buffered x/out tiles + resident constants + headroom.
    const_bytes = sum(int(a.size) * a.dtype.itemsize
                      for a in (w1t, b1, w2, w3, w4, bcat, w5))
    tile_bytes = 2 * (tile * in_size * x.dtype.itemsize + tile * 4)
    vmem_limit = int(min(max(tile_bytes + 2 * const_bytes + (8 << 20), 16 << 20),
                         32 << 20))

    out3d = pl.pallas_call(
        mlp_kernel,
        out_shape=jax.ShapeDtypeStruct((num_tiles, 1, tile), jnp.float32),
        grid_spec=pltpu.PrefetchScalarGridSpec(
            num_scalar_prefetch=0,
            grid=(num_tiles,),
            in_specs=[
                pl.BlockSpec((tile, in_size), lambda i: (i, 0)),
                full(w1t), full(b1),
                full(w2), full(w3), full(w4), full(bcat),
                full(w5),
                pl.BlockSpec(memory_space=pltpu.MemorySpace.SMEM),
            ],
            # Lane-dense output slab: one (1, tile) row per grid step.
            out_specs=pl.BlockSpec((None, 1, tile), lambda i: (i, 0, 0)),
        ),
        compiler_params=pltpu.CompilerParams(
            dimension_semantics=("parallel",),   # shards grid across v7x TCs
            vmem_limit_bytes=vmem_limit),
    )(x, w1t, b1, w2, w3, w4, bcat, w5, b5)

    # (num_tiles, 1, tile) row-major == batch order; back to (B, 1).
    return out3d.reshape(-1)[:B][:, None]


def init_params(key, input_size, hs1, hs2, hs3, hs4):
    """Deterministic init; weights stored PyTorch-style (out_features, in_features)."""
    dims = [(hs1, input_size), (hs2, hs1), (hs3, hs2), (hs4, hs3), (1, hs4)]
    params = {}
    for idx, (out_f, in_f) in enumerate(dims, start=1):
        key, kw, kb = jax.random.split(key, 3)
        bound = 1.0 / jnp.sqrt(in_f)
        params[f"w{idx}"] = jax.random.uniform(
            kw, (out_f, in_f), jnp.float32, minval=-bound, maxval=bound)
        params[f"b{idx}"] = jax.random.uniform(
            kb, (out_f,), jnp.float32, minval=-bound, maxval=bound)
    return params


def ann_reference(x, params):
    """Plain-JAX reference mirroring the kernel's math (bf16 MXU operands, f32 accum)."""
    bf16, f32 = jnp.bfloat16, jnp.float32
    h = x.astype(bf16)
    for idx in range(1, 5):
        w = params[f"w{idx}"].astype(bf16)
        acc = jnp.dot(h.astype(f32), w.T.astype(f32)) + params[f"b{idx}"][None, :]
        h = jnp.where(acc > 0, acc, LEAKY_SLOPE * acc).astype(bf16)
    w5 = params["w5"].astype(bf16)
    return jnp.dot(h.astype(f32), w5.T.astype(f32)) + params["b5"][None, :]


if __name__ == "__main__":
    input_size = 360
    hs1, hs2, hs3, hs4 = 64, 64, 32, 32

    key = jax.random.PRNGKey(0)
    key, kp = jax.random.split(key)
    params = init_params(kp, input_size, hs1, hs2, hs3, hs4)

    # Two cases: single-tile/no-pad path (384) and multi-tile/even-grid + padding path (1037).
    for batch in (384, 1037):
        key, kx = jax.random.split(key)
        x = jax.random.normal(kx, (batch, input_size), jnp.float32)
        out = jax.block_until_ready(ann_forward(x, params))
        ref = ann_reference(x, params)
        assert out.shape == (batch, 1), out.shape
        assert jnp.allclose(out, ref, atol=1e-3, rtol=1e-3), f"mismatch vs reference (batch={batch})"

    print("KERNEL_OK")
</pallas_src>

<mosaic_0001>
module attributes {stable_mosaic.version = 11 : i64} {
  func.func @mlp_kernel(%arg0: i32, %arg1: memref<384x360xf32, #tpu.memory_space<vmem>>, %arg2: memref<360x64xbf16, #tpu.memory_space<vmem>>, %arg3: memref<1x64xf32, #tpu.memory_space<vmem>>, %arg4: memref<64x64xbf16, #tpu.memory_space<vmem>>, %arg5: memref<32x64xbf16, #tpu.memory_space<vmem>>, %arg6: memref<32x32xbf16, #tpu.memory_space<vmem>>, %arg7: memref<128x1xf32, #tpu.memory_space<vmem>>, %arg8: memref<1x32xbf16, #tpu.memory_space<vmem>>, %arg9: memref<1x1xf32, #tpu.memory_space<smem>>, %arg10: memref<1x1x384xf32, #tpu.memory_space<vmem>>) attributes {dimension_semantics = [#tpu.dimension_semantics<parallel>], iteration_bounds = array<i64: 1>, scalar_prefetch = 0 : i64, scratch_operands = 0 : i64, tpu.core_type = #tpu.core_type<tc>, window_params = [{transform_indices = @transform_0, window_bounds = array<i64: 384, 360>}, {pipeline_mode = #tpu.pipeline_mode<synchronous>, transform_indices = @transform_1, window_bounds = array<i64: 360, 64>}, {pipeline_mode = #tpu.pipeline_mode<synchronous>, transform_indices = @transform_2, window_bounds = array<i64: 1, 64>}, {pipeline_mode = #tpu.pipeline_mode<synchronous>, transform_indices = @transform_3, window_bounds = array<i64: 64, 64>}, {pipeline_mode = #tpu.pipeline_mode<synchronous>, transform_indices = @transform_4, window_bounds = array<i64: 32, 64>}, {pipeline_mode = #tpu.pipeline_mode<synchronous>, transform_indices = @transform_5, window_bounds = array<i64: 32, 32>}, {pipeline_mode = #tpu.pipeline_mode<synchronous>, transform_indices = @transform_6, window_bounds = array<i64: 128, 1>}, {pipeline_mode = #tpu.pipeline_mode<synchronous>, transform_indices = @transform_7, window_bounds = array<i64: 1, 32>}, {transform_indices = @transform_8, window_bounds = array<i64: 1, 1>}, {transform_indices = @transform_9, window_bounds = array<i64: 1, 1, 384>}]} {
    %c0 = arith.constant 0 : index
    %c0_0 = arith.constant 0 : index
    %0 = vector.load %arg1[%c0, %c0_0] : memref<384x360xf32, #tpu.memory_space<vmem>>, vector<384x360xf32>
    %1 = arith.truncf %0 : vector<384x360xf32> to vector<384x360xbf16>
    %c0_1 = arith.constant 0 : index
    %c0_2 = arith.constant 0 : index
    %2 = vector.load %arg2[%c0_1, %c0_2] : memref<360x64xbf16, #tpu.memory_space<vmem>>, vector<360x64xbf16>
    %cst = arith.constant dense<0.000000e+00> : vector<384x64xf32>
    %3 = tpu.matmul %1, %2, %cst {dimension_numbers = #tpu.dot_dimension_numbers<[1], [0], [0], [1], [0, 0, 1, 1], [], []>} : vector<384x360xbf16>, vector<360x64xbf16>, vector<384x64xf32> -> vector<384x64xf32>
    %c0_3 = arith.constant 0 : index
    %c0_4 = arith.constant 0 : index
    %4 = vector.load %arg3[%c0_3, %c0_4] : memref<1x64xf32, #tpu.memory_space<vmem>>, vector<1x64xf32>
    %5 = vector.broadcast %4 : vector<1x64xf32> to vector<384x64xf32>
    %6 = arith.addf %3, %5 : vector<384x64xf32>
    %cst_5 = arith.constant 0.000000e+00 : f32
    %7 = vector.broadcast %cst_5 : f32 to vector<384x64xf32>
    %8 = arith.cmpf ogt, %6, %7 : vector<384x64xf32>
    %cst_6 = arith.constant 0.00999999977 : f32
    %9 = vector.broadcast %cst_6 : f32 to vector<384x64xf32>
    %10 = arith.mulf %9, %6 : vector<384x64xf32>
    %11 = arith.select %8, %6, %10 : vector<384x64xi1>, vector<384x64xf32>
    %12 = arith.truncf %11 : vector<384x64xf32> to vector<384x64xbf16>
    %13 = tpu.transpose %12, [1, 0] : vector<384x64xbf16> -> vector<64x384xbf16>
    %c0_7 = arith.constant 0 : index
    %c0_8 = arith.constant 0 : index
    %14 = vector.load %arg7[%c0_7, %c0_8] : memref<128x1xf32, #tpu.memory_space<vmem>>, vector<64x1xf32>
    %c64 = arith.constant 64 : index
    %c0_9 = arith.constant 0 : index
    %15 = vector.load %arg7[%c64, %c0_9] : memref<128x1xf32, #tpu.memory_space<vmem>>, vector<32x1xf32>
    %c96 = arith.constant 96 : index
    %c0_10 = arith.constant 0 : index
    %16 = vector.load %arg7[%c96, %c0_10] : memref<128x1xf32, #tpu.memory_space<vmem>>, vector<32x1xf32>
    %c0_11 = arith.constant 0 : index
    %c0_12 = arith.constant 0 : index
    %17 = vector.load %arg4[%c0_11, %c0_12] : memref<64x64xbf16, #tpu.memory_space<vmem>>, vector<64x64xbf16>
    %cst_13 = arith.constant dense<0.000000e+00> : vector<64x384xf32>
    %18 = tpu.matmul %17, %13, %cst_13 {dimension_numbers = #tpu.dot_dimension_numbers<[1], [0], [0], [1], [0, 0, 1, 1], [], []>} : vector<64x64xbf16>, vector<64x384xbf16>, vector<64x384xf32> -> vector<64x384xf32>
    %19 = vector.broadcast %14 : vector<64x1xf32> to vector<64x384xf32>
    %20 = arith.addf %18, %19 : vector<64x384xf32>
    %cst_14 = arith.constant 0.000000e+00 : f32
    %21 = vector.broadcast %cst_14 : f32 to vector<64x384xf32>
    %22 = arith.cmpf ogt, %20, %21 : vector<64x384xf32>
    %cst_15 = arith.constant 0.00999999977 : f32
    %23 = vector.broadcast %cst_15 : f32 to vector<64x384xf32>
    %24 = arith.mulf %23, %20 : vector<64x384xf32>
    %25 = arith.select %22, %20, %24 : vector<64x384xi1>, vector<64x384xf32>
    %26 = arith.truncf %25 : vector<64x384xf32> to vector<64x384xbf16>
    %c0_16 = arith.constant 0 : index
    %c0_17 = arith.constant 0 : index
    %27 = vector.load %arg5[%c0_16, %c0_17] : memref<32x64xbf16, #tpu.memory_space<vmem>>, vector<32x64xbf16>
    %cst_18 = arith.constant dense<0.000000e+00> : vector<32x384xf32>
    %28 = tpu.matmul %27, %26, %cst_18 {dimension_numbers = #tpu.dot_dimension_numbers<[1], [0], [0], [1], [0, 0, 1, 1], [], []>} : vector<32x64xbf16>, vector<64x384xbf16>, vector<32x384xf32> -> vector<32x384xf32>
    %29 = vector.broadcast %15 : vector<32x1xf32> to vector<32x384xf32>
    %30 = arith.addf %28, %29 : vector<32x384xf32>
    %cst_19 = arith.constant 0.000000e+00 : f32
    %31 = vector.broadcast %cst_19 : f32 to vector<32x384xf32>
    %32 = arith.cmpf ogt, %30, %31 : vector<32x384xf32>
    %cst_20 = arith.constant 0.00999999977 : f32
    %33 = vector.broadcast %cst_20 : f32 to vector<32x384xf32>
    %34 = arith.mulf %33, %30 : vector<32x384xf32>
    %35 = arith.select %32, %30, %34 : vector<32x384xi1>, vector<32x384xf32>
    %36 = arith.truncf %35 : vector<32x384xf32> to vector<32x384xbf16>
    %c0_21 = arith.constant 0 : index
    %c0_22 = arith.constant 0 : index
    %37 = vector.load %arg6[%c0_21, %c0_22] : memref<32x32xbf16, #tpu.memory_space<vmem>>, vector<32x32xbf16>
    %cst_23 = arith.constant dense<0.000000e+00> : vector<32x384xf32>
    %38 = tpu.matmul %37, %36, %cst_23 {dimension_numbers = #tpu.dot_dimension_numbers<[1], [0], [0], [1], [0, 0, 1, 1], [], []>} : vector<32x32xbf16>, vector<32x384xbf16>, vector<32x384xf32> -> vector<32x384xf32>
    %39 = vector.broadcast %16 : vector<32x1xf32> to vector<32x384xf32>
    %40 = arith.addf %38, %39 : vector<32x384xf32>
    %cst_24 = arith.constant 0.000000e+00 : f32
    %41 = vector.broadcast %cst_24 : f32 to vector<32x384xf32>
    %42 = arith.cmpf ogt, %40, %41 : vector<32x384xf32>
    %cst_25 = arith.constant 0.00999999977 : f32
    %43 = vector.broadcast %cst_25 : f32 to vector<32x384xf32>
    %44 = arith.mulf %43, %40 : vector<32x384xf32>
    %45 = arith.select %42, %40, %44 : vector<32x384xi1>, vector<32x384xf32>
    %46 = arith.truncf %45 : vector<32x384xf32> to vector<32x384xbf16>
    %c0_26 = arith.constant 0 : index
    %c0_27 = arith.constant 0 : index
    %47 = vector.load %arg8[%c0_26, %c0_27] : memref<1x32xbf16, #tpu.memory_space<vmem>>, vector<1x32xbf16>
    %cst_28 = arith.constant dense<0.000000e+00> : vector<1x384xf32>
    %48 = tpu.matmul %47, %46, %cst_28 {dimension_numbers = #tpu.dot_dimension_numbers<[1], [0], [0], [1], [0, 0, 1, 1], [], []>} : vector<1x32xbf16>, vector<32x384xbf16>, vector<1x384xf32> -> vector<1x384xf32>
    %c0_29 = arith.constant 0 : index
    %c0_30 = arith.constant 0 : index
    %49 = memref.load %arg9[%c0_29, %c0_30] : memref<1x1xf32, #tpu.memory_space<smem>>
    %50 = vector.broadcast %49 : f32 to vector<1x384xf32>
    %51 = arith.addf %48, %50 : vector<1x384xf32>
    %c0_31 = arith.constant 0 : index
    %c0_32 = arith.constant 0 : index
    %c0_33 = arith.constant 0 : index
    %52 = vector.load %arg10[%c0_31, %c0_32, %c0_33] : memref<1x1x384xf32, #tpu.memory_space<vmem>>, vector<1x1x384xf32>
    %53 = vector.shape_cast %52 : vector<1x1x384xf32> to vector<1x384xf32>
    %54 = vector.shape_cast %51 : vector<1x384xf32> to vector<1x1x384xf32>
    tpu.vector_store %arg10[%c0_31, %c0_32, %c0_33], %54 {strides = array<i32>} : memref<1x1x384xf32, #tpu.memory_space<vmem>>, vector<1x1x384xf32>,
    return
  }
  func.func @transform_0(%arg0: i32) -> (i32, i32) {
    %c0_i32 = arith.constant 0 : i32
    %c0_i32_0 = arith.constant 0 : i32
    return %arg0, %c0_i32 : i32, i32
  }
  func.func @transform_1(%arg0: i32) -> (i32, i32) {
    %c0_i32 = arith.constant 0 : i32
    %c0_i32_0 = arith.constant 0 : i32
    %c0_i32_1 = arith.constant 0 : i32
    return %c0_i32, %c0_i32_0 : i32, i32
  }
  func.func @transform_2(%arg0: i32) -> (i32, i32) {
    %c0_i32 = arith.constant 0 : i32
    %c0_i32_0 = arith.constant 0 : i32
    %c0_i32_1 = arith.constant 0 : i32
    return %c0_i32, %c0_i32_0 : i32, i32
  }
  func.func @transform_3(%arg0: i32) -> (i32, i32) {
    %c0_i32 = arith.constant 0 : i32
    %c0_i32_0 = arith.constant 0 : i32
    %c0_i32_1 = arith.constant 0 : i32
    return %c0_i32, %c0_i32_0 : i32, i32
  }
  func.func @transform_4(%arg0: i32) -> (i32, i32) {
    %c0_i32 = arith.constant 0 : i32
    %c0_i32_0 = arith.constant 0 : i32
    %c0_i32_1 = arith.constant 0 : i32
    return %c0_i32, %c0_i32_0 : i32, i32
  }
  func.func @transform_5(%arg0: i32) -> (i32, i32) {
    %c0_i32 = arith.constant 0 : i32
    %c0_i32_0 = arith.constant 0 : i32
    %c0_i32_1 = arith.constant 0 : i32
    return %c0_i32, %c0_i32_0 : i32, i32
  }
  func.func @transform_6(%arg0: i32) -> (i32, i32) {
    %c0_i32 = arith.constant 0 : i32
    %c0_i32_0 = arith.constant 0 : i32
    %c0_i32_1 = arith.constant 0 : i32
    return %c0_i32, %c0_i32_0 : i32, i32
  }
  func.func @transform_7(%arg0: i32) -> (i32, i32) {
    %c0_i32 = arith.constant 0 : i32
    %c0_i32_0 = arith.constant 0 : i32
    %c0_i32_1 = arith.constant 0 : i32
    return %c0_i32, %c0_i32_0 : i32, i32
  }
  func.func @transform_8(%arg0: i32) -> (i32, i32) {
    %c0_i32 = arith.constant 0 : i32
    %c0_i32_0 = arith.constant 0 : i32
    %c0_i32_1 = arith.constant 0 : i32
    return %c0_i32, %c0_i32_0 : i32, i32
  }
  func.func @transform_9(%arg0: i32) -> (i32, i32, i32) {
    %c0_i32 = arith.constant 0 : i32
    %c0_i32_0 = arith.constant 0 : i32
    %c0_i32_1 = arith.constant 0 : i32
    return %arg0, %c0_i32, %c0_i32_0 : i32, i32, i32
  }
}

</mosaic_0001>

<llo_original>
// kernel: tpu_custom_call.1
$region0: #{tpu_custom_call.1}
  #allocation0 [shape = 'u32[]', space=smem, size = 0x4, offset = 0x4, fixed_abs, tag = 'smem constant byte address 0x4 - core index']
  #allocation1 [shape = 'u32[144,128]{1,0:T(1,128)}', space=vmem, size = 0x12000, scoped, tag = 'internal scratch']
  #allocation2 [shape = 'f32[1,1]{1,0:T(1,128)S(6)}', space=smem, size = 0x200, scoped, tag = 'scoped memory for tpu_custom_call.1']
  %s0 = inlined_call_operand.vmem [shape: f32[384,360], index: 0, kind: input, shape index: {}]
  %s1 = inlined_call_operand.vmem [shape: bf16[360,64], index: 1, kind: input, shape index: {}]
  %s2 = inlined_call_operand.vmem [shape: f32[1,64], index: 2, kind: input, shape index: {}]
  %s3 = inlined_call_operand.vmem [shape: bf16[64,64], index: 3, kind: input, shape index: {}]
  %s4 = inlined_call_operand.vmem [shape: bf16[32,64], index: 4, kind: input, shape index: {}]
  %s5 = inlined_call_operand.vmem [shape: bf16[32,32], index: 5, kind: input, shape index: {}]
  %s6 = inlined_call_operand.vmem [shape: f32[128,1], index: 6, kind: input, shape index: {}]
  %s7 = inlined_call_operand.vmem [shape: bf16[1,32], index: 7, kind: input, shape index: {}]
  %s8 = inlined_call_operand.<no memory space> [shape: f32[1,1], index: 8, kind: input, shape index: {}]
  %s9 = inlined_call_operand.hbm [shape: f32[1,1,384], index: 9, kind: output, shape index: {}]
  %s10 = sld [smem:[#allocation0]]
  $region46: #{tpu_custom_call.1} parent=0
    _
  %s12 = ssub.s32 1, %s10
  %s13 = scalar_select 0, %s12, %s10
  %14 = sst [smem:[#allocation2]] %s8
  $region1: #{tpu_custom_call.1} parent=0
    #allocation3 [shape = 'u8[1536]{0}', space=vmem, size = 0x800, scoped, tag = 'output window, operand 0, single buffered']
    #allocation4 [shape = 's32[1]{0}', space=sflag, size = 0x4, scoped, tag = 'scoped memory for tpu_custom_call.1']
    %15 = vsyncpa [#allocation4], 0
    // Predicated region
    $region2: #{tpu_custom_call.1} parent=1 // pred_check
      _
    $region3: #{tpu_custom_call.1} parent=1 // pred_check_branch
      %17 = sbr.rel (0) target = $region5
    $region4: #{tpu_custom_call.1} parent=1 // pred_region
      _
    $region5: #{tpu_custom_call.1} parent=1 // pred_fallthru
      _
    // Predicated region
    $region6: #{tpu_custom_call.1} parent=1 // pred_check
      _
    $region7: #{tpu_custom_call.1} parent=1 // pred_check_branch
      %19 = sbr.rel (0) target = $region9
    $region8: #{tpu_custom_call.1} parent=1 // pred_region
      _
    $region9: #{tpu_custom_call.1} parent=1 // pred_fallthru
      _
    // Predicated region
    $region10: #{tpu_custom_call.1} parent=1 // pred_check
      _
    $region11: #{tpu_custom_call.1} parent=1 // pred_check_branch
      %21 = sbr.rel (0) target = $region13
    $region12: #{tpu_custom_call.1} parent=1 // pred_region
      _
    $region13: #{tpu_custom_call.1} parent=1 // pred_fallthru
      _
    // Predicated region
    $region14: #{tpu_custom_call.1} parent=1 // pred_check
      _
    $region15: #{tpu_custom_call.1} parent=1 // pred_check_branch
      %23 = sbr.rel (0) target = $region17
    $region16: #{tpu_custom_call.1} parent=1 // pred_region
      _
    $region17: #{tpu_custom_call.1} parent=1 // pred_fallthru
      _
    // Predicated region
    $region18: #{tpu_custom_call.1} parent=1 // pred_check
      _
    $region19: #{tpu_custom_call.1} parent=1 // pred_check_branch
      %25 = sbr.rel (0) target = $region21
    $region20: #{tpu_custom_call.1} parent=1 // pred_region
      _
    $region21: #{tpu_custom_call.1} parent=1 // pred_fallthru
      _
    // Predicated region
    $region22: #{tpu_custom_call.1} parent=1 // pred_check
      _
    $region23: #{tpu_custom_call.1} parent=1 // pred_check_branch
      %27 = sbr.rel (0) target = $region25
    $region24: #{tpu_custom_call.1} parent=1 // pred_region
      _
    $region25: #{tpu_custom_call.1} parent=1 // pred_fallthru
      _
    // Predicated region
    $region26: #{tpu_custom_call.1} parent=1 // pred_check
      _
    $region27: #{tpu_custom_call.1} parent=1 // pred_check_branch
      %29 = sbr.rel (0) target = $region29
    $region28: #{tpu_custom_call.1} parent=1 // pred_region
      _
    $region29: #{tpu_custom_call.1} parent=1 // pred_fallthru
      _
    // Predicated region
    $region30: #{tpu_custom_call.1} parent=1 // pred_check
      _
    $region31: #{tpu_custom_call.1} parent=1 // pred_check_branch
      %31 = sbr.rel (0) target = $region33
    $region32: #{tpu_custom_call.1} parent=1 // pred_region
      _
    $region33: #{tpu_custom_call.1} parent=1 // pred_fallthru
      _
    // Predicated region
    $region34: #{tpu_custom_call.1} parent=1 // pred_check
      _
    $region35: #{tpu_custom_call.1} parent=1 // pred_check_branch
      %33 = sbr.rel (0) target = $region37
    $region36: #{tpu_custom_call.1} parent=1 // pred_region
      _
    $region37: #{tpu_custom_call.1} parent=1 // pred_fallthru
      _
    %v35 = vld [vmem:[%s0] sm:$0xff]
    %v36 = vld [vmem:[%s0 + $0x8] sm:$0xff]
    %v37 = vld [vmem:[%s0 + $0x10] sm:$0xff]
    %v38 = vld [vmem:[%s0 + $0x18] sm:$0xff]
    %v39 = vld [vmem:[%s0 + $0x20] sm:$0xff]
    %v40 = vld [vmem:[%s0 + $0x28] sm:$0xff]
    %v41 = vld [vmem:[%s0 + $0x30] sm:$0xff]
    %v42 = vld [vmem:[%s0 + $0x38] sm:$0xff]
    %v43 = vld [vmem:[%s0 + $0x40] sm:$0xff]
    %v44 = vld [vmem:[%s0 + $0x48] sm:$0xff]
    %v45 = vld [vmem:[%s0 + $0x50] sm:$0xff]
    %v46 = vld [vmem:[%s0 + $0x58] sm:$0xff]
    %v47 = vld [vmem:[%s0 + $0x60] sm:$0xff]
    %v48 = vld [vmem:[%s0 + $0x68] sm:$0xff]
    %v49 = vld [vmem:[%s0 + $0x70] sm:$0xff]
    %v50 = vld [vmem:[%s0 + $0x78] sm:$0xff]
    %v51 = vld [vmem:[%s0 + $0x80] sm:$0xff]
    %v52 = vld [vmem:[%s0 + $0x88] sm:$0xff]
    %v53 = vld [vmem:[%s0 + $0x90] sm:$0xff]
    %v54 = vld [vmem:[%s0 + $0x98] sm:$0xff]
    %v55 = vld [vmem:[%s0 + $0xa0] sm:$0xff]
    %v56 = vld [vmem:[%s0 + $0xa8] sm:$0xff]
    %v57 = vld [vmem:[%s0 + $0xb0] sm:$0xff]
    %v58 = vld [vmem:[%s0 + $0xb8] sm:$0xff]
    %v59 = vld [vmem:[%s0 + $0xc0] sm:$0xff]
    %v60 = vld [vmem:[%s0 + $0xc8] sm:$0xff]
    %v61 = vld [vmem:[%s0 + $0xd0] sm:$0xff]
    %v62 = vld [vmem:[%s0 + $0xd8] sm:$0xff]
    %v63 = vld [vmem:[%s0 + $0xe0] sm:$0xff]
    %v64 = vld [vmem:[%s0 + $0xe8] sm:$0xff]
    %v65 = vld [vmem:[%s0 + $0xf0] sm:$0xff]
    %v66 = vld [vmem:[%s0 + $0xf8] sm:$0xff]
    %v67 = vld [vmem:[%s0 + $0x100] sm:$0xff]
    %v68 = vld [vmem:[%s0 + $0x108] sm:$0xff]
    %v69 = vld [vmem:[%s0 + $0x110] sm:$0xff]
    %v70 = vld [vmem:[%s0 + $0x118] sm:$0xff]
    %v71 = vld [vmem:[%s0 + $0x120] sm:$0xff]
    %v72 = vld [vmem:[%s0 + $0x128] sm:$0xff]
    %v73 = vld [vmem:[%s0 + $0x130] sm:$0xff]
    %v74 = vld [vmem:[%s0 + $0x138] sm:$0xff]
    %v75 = vld [vmem:[%s0 + $0x140] sm:$0xff]
    %v76 = vld [vmem:[%s0 + $0x148] sm:$0xff]
    %v77 = vld [vmem:[%s0 + $0x150] sm:$0xff]
    %v78 = vld [vmem:[%s0 + $0x158] sm:$0xff]
    %v79 = vld [vmem:[%s0 + $0x160] sm:$0xff]
    %v80 = vld [vmem:[%s0 + $0x168] sm:$0xff]
    %v81 = vld [vmem:[%s0 + $0x170] sm:$0xff]
    %v82 = vld [vmem:[%s0 + $0x178] sm:$0xff]
    %v83 = vld [vmem:[%s0 + $0x180] sm:$0xff]
    %v84 = vld [vmem:[%s0 + $0x188] sm:$0xff]
    %v85 = vld [vmem:[%s0 + $0x190] sm:$0xff]
    %v86 = vld [vmem:[%s0 + $0x198] sm:$0xff]
    %v87 = vld [vmem:[%s0 + $0x1a0] sm:$0xff]
    %v88 = vld [vmem:[%s0 + $0x1a8] sm:$0xff]
    %v89 = vld [vmem:[%s0 + $0x1b0] sm:$0xff]
    %v90 = vld [vmem:[%s0 + $0x1b8] sm:$0xff]
    %v91 = vld [vmem:[%s0 + $0x1c0] sm:$0xff]
    %v92 = vld [vmem:[%s0 + $0x1c8] sm:$0xff]
    %v93 = vld [vmem:[%s0 + $0x1d0] sm:$0xff]
    %v94 = vld [vmem:[%s0 + $0x1d8] sm:$0xff]
    %v95 = vld [vmem:[%s0 + $0x1e0] sm:$0xff]
    %v96 = vld [vmem:[%s0 + $0x1e8] sm:$0xff]
    %v97 = vld [vmem:[%s0 + $0x1f0] sm:$0xff]
    %v98 = vld [vmem:[%s0 + $0x1f8] sm:$0xff]
    %v99 = vld [vmem:[%s0 + $0x200] sm:$0xff]
    %v100 = vld [vmem:[%s0 + $0x208] sm:$0xff]
    %v101 = vld [vmem:[%s0 + $0x210] sm:$0xff]
    %v102 = vld [vmem:[%s0 + $0x218] sm:$0xff]
    %v103 = vld [vmem:[%s0 + $0x220] sm:$0xff]
    %v104 = vld [vmem:[%s0 + $0x228] sm:$0xff]
    %v105 = vld [vmem:[%s0 + $0x230] sm:$0xff]
    %v106 = vld [vmem:[%s0 + $0x238] sm:$0xff]
    %v107 = vld [vmem:[%s0 + $0x240] sm:$0xff]
    %v108 = vld [vmem:[%s0 + $0x248] sm:$0xff]
    %v109 = vld [vmem:[%s0 + $0x250] sm:$0xff]
    %v110 = vld [vmem:[%s0 + $0x258] sm:$0xff]
    %v111 = vld [vmem:[%s0 + $0x260] sm:$0xff]
    %v112 = vld [vmem:[%s0 + $0x268] sm:$0xff]
    %v113 = vld [vmem:[%s0 + $0x270] sm:$0xff]
    %v114 = vld [vmem:[%s0 + $0x278] sm:$0xff]
    %v115 = vld [vmem:[%s0 + $0x280] sm:$0xff]
    %v116 = vld [vmem:[%s0 + $0x288] sm:$0xff]
    %v117 = vld [vmem:[%s0 + $0x290] sm:$0xff]
    %v118 = vld [vmem:[%s0 + $0x298] sm:$0xff]
    %v119 = vld [vmem:[%s0 + $0x2a0] sm:$0xff]
    %v120 = vld [vmem:[%s0 + $0x2a8] sm:$0xff]
    %v121 = vld [vmem:[%s0 + $0x2b0] sm:$0xff]
    %v122 = vld [vmem:[%s0 + $0x2b8] sm:$0xff]
    %v123 = vld [vmem:[%s0 + $0x2c0] sm:$0xff]
    %v124 = vld [vmem:[%s0 + $0x2c8] sm:$0xff]
    %v125 = vld [vmem:[%s0 + $0x2d0] sm:$0xff]
    %v126 = vld [vmem:[%s0 + $0x2d8] sm:$0xff]
    %v127 = vld [vmem:[%s0 + $0x2e0] sm:$0xff]
    %v128 = vld [vmem:[%s0 + $0x2e8] sm:$0xff]
    %v129 = vld [vmem:[%s0 + $0x2f0] sm:$0xff]
    %v130 = vld [vmem:[%s0 + $0x2f8] sm:$0xff]
    %v131 = vld [vmem:[%s0 + $0x300] sm:$0xff]
    %v132 = vld [vmem:[%s0 + $0x308] sm:$0xff]
    %v133 = vld [vmem:[%s0 + $0x310] sm:$0xff]
    %v134 = vld [vmem:[%s0 + $0x318] sm:$0xff]
    %v135 = vld [vmem:[%s0 + $0x320] sm:$0xff]
    %v136 = vld [vmem:[%s0 + $0x328] sm:$0xff]
    %v137 = vld [vmem:[%s0 + $0x330] sm:$0xff]
    %v138 = vld [vmem:[%s0 + $0x338] sm:$0xff]
    %v139 = vld [vmem:[%s0 + $0x340] sm:$0xff]
    %v140 = vld [vmem:[%s0 + $0x348] sm:$0xff]
    %v141 = vld [vmem:[%s0 + $0x350] sm:$0xff]
    %v142 = vld [vmem:[%s0 + $0x358] sm:$0xff]
    %v143 = vld [vmem:[%s0 + $0x360] sm:$0xff]
    %v144 = vld [vmem:[%s0 + $0x368] sm:$0xff]
    %v145 = vld [vmem:[%s0 + $0x370] sm:$0xff]
    %v146 = vld [vmem:[%s0 + $0x378] sm:$0xff]
    %v147 = vld [vmem:[%s0 + $0x380] sm:$0xff]
    %v148 = vld [vmem:[%s0 + $0x388] sm:$0xff]
    %v149 = vld [vmem:[%s0 + $0x390] sm:$0xff]
    %v150 = vld [vmem:[%s0 + $0x398] sm:$0xff]
    %v151 = vld [vmem:[%s0 + $0x3a0] sm:$0xff]
    %v152 = vld [vmem:[%s0 + $0x3a8] sm:$0xff]
    %v153 = vld [vmem:[%s0 + $0x3b0] sm:$0xff]
    %v154 = vld [vmem:[%s0 + $0x3b8] sm:$0xff]
    %v155 = vld [vmem:[%s0 + $0x3c0] sm:$0xff]
    %v156 = vld [vmem:[%s0 + $0x3c8] sm:$0xff]
    %v157 = vld [vmem:[%s0 + $0x3d0] sm:$0xff]
    %v158 = vld [vmem:[%s0 + $0x3d8] sm:$0xff]
    %v159 = vld [vmem:[%s0 + $0x3e0] sm:$0xff]
    %v160 = vld [vmem:[%s0 + $0x3e8] sm:$0xff]
    %v161 = vld [vmem:[%s0 + $0x3f0] sm:$0xff]
    %v162 = vld [vmem:[%s0 + $0x3f8] sm:$0xff]
    %v163 = vld [vmem:[%s0 + $0x400] sm:$0xff]
    %v164 = vld [vmem:[%s0 + $0x408] sm:$0xff]
    %v165 = vld [vmem:[%s0 + $0x410] sm:$0xff]
    %v166 = vld [vmem:[%s0 + $0x418] sm:$0xff]
    %v167 = vld [vmem:[%s0 + $0x420] sm:$0xff]
    %v168 = vld [vmem:[%s0 + $0x428] sm:$0xff]
    %v169 = vld [vmem:[%s0 + $0x430] sm:$0xff]
    %v170 = vld [vmem:[%s0 + $0x438] sm:$0xff]
    %v171 = vld [vmem:[%s0 + $0x440] sm:$0xff]
    %v172 = vld [vmem:[%s0 + $0x448] sm:$0xff]
    %v173 = vld [vmem:[%s0 + $0x450] sm:$0xff]
    %v174 = vld [vmem:[%s0 + $0x458] sm:$0xff]
    %v175 = vld [vmem:[%s0 + $0x460] sm:$0xff]
    %v176 = vld [vmem:[%s0 + $0x468] sm:$0xff]
    %v177 = vld [vmem:[%s0 + $0x470] sm:$0xff]
    %v178 = vld [vmem:[%s0 + $0x478] sm:$0xff]
    %v179 = vpack.c.bf16 %v38, %v35
    %v180 = vpack.c.bf16 %v39, %v36
    %v181 = vpack.c.bf16 %v40, %v37
    %v182 = vpack.c.bf16 %v44, %v41
    %v183 = vpack.c.bf16 %v45, %v42
    %v184 = vpack.c.bf16 %v46, %v43
    %v185 = vpack.c.bf16 %v50, %v47
    %v186 = vpack.c.bf16 %v51, %v48
    %v187 = vpack.c.bf16 %v52, %v49
    %v188 = vpack.c.bf16 %v56, %v53
    %v189 = vpack.c.bf16 %v57, %v54
    %v190 = vpack.c.bf16 %v58, %v55
    %v191 = vpack.c.bf16 %v62, %v59
    %v192 = vpack.c.bf16 %v63, %v60
    %v193 = vpack.c.bf16 %v64, %v61
    %v194 = vpack.c.bf16 %v68, %v65
    %v195 = vpack.c.bf16 %v69, %v66
    %v196 = vpack.c.bf16 %v70, %v67
    %v197 = vpack.c.bf16 %v74, %v71
    %v198 = vpack.c.bf16 %v75, %v72
    %v199 = vpack.c.bf16 %v76, %v73
    %v200 = vpack.c.bf16 %v80, %v77
    %v201 = vpack.c.bf16 %v81, %v78
    %v202 = vpack.c.bf16 %v82, %v79
    %v203 = vpack.c.bf16 %v86, %v83
    %v204 = vpack.c.bf16 %v87, %v84
    %v205 = vpack.c.bf16 %v88, %v85
    %v206 = vpack.c.bf16 %v92, %v89
    %v207 = vpack.c.bf16 %v93, %v90
    %v208 = vpack.c.bf16 %v94, %v91
    %v209 = vpack.c.bf16 %v98, %v95
    %v210 = vpack.c.bf16 %v99, %v96
    %v211 = vpack.c.bf16 %v100, %v97
    %v212 = vpack.c.bf16 %v104, %v101
    %v213 = vpack.c.bf16 %v105, %v102
    %v214 = vpack.c.bf16 %v106, %v103
    %v215 = vpack.c.bf16 %v110, %v107
    %v216 = vpack.c.bf16 %v111, %v108
    %v217 = vpack.c.bf16 %v112, %v109
    %v218 = vpack.c.bf16 %v116, %v113
    %v219 = vpack.c.bf16 %v117, %v114
    %v220 = vpack.c.bf16 %v118, %v115
    %v221 = vpack.c.bf16 %v122, %v119
    %v222 = vpack.c.bf16 %v123, %v120
    %v223 = vpack.c.bf16 %v124, %v121
    %v224 = vpack.c.bf16 %v128, %v125
    %v225 = vpack.c.bf16 %v129, %v126
    %v226 = vpack.c.bf16 %v130, %v127
    %v227 = vpack.c.bf16 %v134, %v131
    %v228 = vpack.c.bf16 %v135, %v132
    %v229 = vpack.c.bf16 %v136, %v133
    %v230 = vpack.c.bf16 %v140, %v137
    %v231 = vpack.c.bf16 %v141, %v138
    %v232 = vpack.c.bf16 %v142, %v139
    %v233 = vpack.c.bf16 %v146, %v143
    %v234 = vpack.c.bf16 %v147, %v144
    %v235 = vpack.c.bf16 %v148, %v145
    %v236 = vpack.c.bf16 %v152, %v149
    %v237 = vpack.c.bf16 %v153, %v150
    %v238 = vpack.c.bf16 %v154, %v151
    %v239 = vpack.c.bf16 %v158, %v155
    %v240 = vpack.c.bf16 %v159, %v156
    %v241 = vpack.c.bf16 %v160, %v157
    %v242 = vpack.c.bf16 %v164, %v161
    %v243 = vpack.c.bf16 %v165, %v162
    %v244 = vpack.c.bf16 %v166, %v163
    %v245 = vpack.c.bf16 %v170, %v167
    %v246 = vpack.c.bf16 %v171, %v168
    %v247 = vpack.c.bf16 %v172, %v169
    %v248 = vpack.c.bf16 %v176, %v173
    %v249 = vpack.c.bf16 %v177, %v174
    %v250 = vpack.c.bf16 %v178, %v175
    %v251 = vld [vmem:[%s1] sm:$0xf]
    %v252 = vld [vmem:[%s1 + $0x4] sm:$0xf]
    %v253 = vld [vmem:[%s1 + $0x8] sm:$0xf]
    %v254 = vld [vmem:[%s1 + $0xc] sm:$0xf]
    %v255 = vld [vmem:[%s1 + $0x10] sm:$0xf]
    %v256 = vld [vmem:[%s1 + $0x14] sm:$0xf]
    %v257 = vld [vmem:[%s1 + $0x18] sm:$0xf]
    %v258 = vld [vmem:[%s1 + $0x1c] sm:$0xf]
    %v259 = vld [vmem:[%s1 + $0x20] sm:$0xf]
    %v260 = vld [vmem:[%s1 + $0x24] sm:$0xf]
    %v261 = vld [vmem:[%s1 + $0x28] sm:$0xf]
    %v262 = vld [vmem:[%s1 + $0x2c] sm:$0xf]
    %v263 = vld [vmem:[%s1 + $0x30] sm:$0xf]
    %v264 = vld [vmem:[%s1 + $0x34] sm:$0xf]
    %v265 = vld [vmem:[%s1 + $0x38] sm:$0xf]
    %v266 = vld [vmem:[%s1 + $0x3c] sm:$0xf]
    %v267 = vld [vmem:[%s1 + $0x40] sm:$0xf]
    %v268 = vld [vmem:[%s1 + $0x44] sm:$0xf]
    %v269 = vld [vmem:[%s1 + $0x48] sm:$0xf]
    %v270 = vld [vmem:[%s1 + $0x4c] sm:$0xf]
    %v271 = vld [vmem:[%s1 + $0x50] sm:$0xf]
    %v272 = vld [vmem:[%s1 + $0x54] sm:$0xf]
    %v273 = vld [vmem:[%s1 + $0x58] sm:$0xf]
    %v274 = vld [vmem:[%s1 + $0x5c] sm:$0xf]
    %v275 = vld [vmem:[%s1 + $0x60] sm:$0xf]
    %v276 = vld [vmem:[%s1 + $0x64] sm:$0xf]
    %v277 = vld [vmem:[%s1 + $0x68] sm:$0xf]
    %v278 = vld [vmem:[%s1 + $0x6c] sm:$0xf]
    %v279 = vld [vmem:[%s1 + $0x70] sm:$0xf]
    %v280 = vld [vmem:[%s1 + $0x74] sm:$0xf]
    %v281 = vld [vmem:[%s1 + $0x78] sm:$0xf]
    %v282 = vld [vmem:[%s1 + $0x7c] sm:$0xf]
    %v283 = vld [vmem:[%s1 + $0x80] sm:$0xf]
    %v284 = vld [vmem:[%s1 + $0x84] sm:$0xf]
    %v285 = vld [vmem:[%s1 + $0x88] sm:$0xf]
    %v286 = vld [vmem:[%s1 + $0x8c] sm:$0xf]
    %v287 = vld [vmem:[%s1 + $0x90] sm:$0xf]
    %v288 = vld [vmem:[%s1 + $0x94] sm:$0xf]
    %v289 = vld [vmem:[%s1 + $0x98] sm:$0xf]
    %v290 = vld [vmem:[%s1 + $0x9c] sm:$0xf]
    %v291 = vld [vmem:[%s1 + $0xa0] sm:$0xf]
    %v292 = vld [vmem:[%s1 + $0xa4] sm:$0xf]
    %v293 = vld [vmem:[%s1 + $0xa8] sm:$0xf]
    %v294 = vld [vmem:[%s1 + $0xac] sm:$0xf]
    %v295 = vld [vmem:[%s1 + $0xb0] sm:$0xf]
    %v296 = vld [vmem:[%s2] sm:$0x1]
    %v298 = vlaneseq
    %v299 = vshrl.u32 %v298, 7
    %v300 = vsub.s32 0, %v299
    %v301 = vrot.slane %v296, %v300
    %v348 = vunpack.c.l.b16 %v251
    %v349 = vunpack.c.l.b16 %v252
    %v350 = vunpack.c.l.b16 %v253
    %v351 = vunpack.c.l.b16 %v254
    %v352 = vunpack.c.l.b16 %v255
    %v353 = vunpack.c.l.b16 %v256
    %v354 = vunpack.c.l.b16 %v257
    %v355 = vunpack.c.l.b16 %v258
    %v356 = vunpack.c.l.b16 %v259
    %v357 = vunpack.c.l.b16 %v260
    %v358 = vunpack.c.l.b16 %v261
    %v359 = vunpack.c.l.b16 %v262
    %v360 = vunpack.c.l.b16 %v263
    %v361 = vunpack.c.l.b16 %v264
    %v362 = vunpack.c.l.b16 %v265
    %v363 = vunpack.c.l.b16 %v266
    %v364 = vunpack.c.l.b16 %v267
    %v365 = vunpack.c.l.b16 %v268
    %v366 = vunpack.c.l.b16 %v269
    %v367 = vunpack.c.l.b16 %v270
    %v368 = vunpack.c.l.b16 %v271
    %v369 = vunpack.c.l.b16 %v272
    %v370 = vunpack.c.l.b16 %v273
    %v371 = vunpack.c.l.b16 %v274
    %v372 = vunpack.c.l.b16 %v275
    %v373 = vunpack.c.l.b16 %v276
    %v374 = vunpack.c.l.b16 %v277
    %v375 = vunpack.c.l.b16 %v278
    %v376 = vunpack.c.l.b16 %v279
    %v377 = vunpack.c.l.b16 %v280
    %v378 = vunpack.c.l.b16 %v281
    %v379 = vunpack.c.l.b16 %v282
    %v380 = vunpack.c.l.b16 %v283
    %v381 = vunpack.c.l.b16 %v284
    %v382 = vunpack.c.l.b16 %v285
    %v383 = vunpack.c.l.b16 %v286
    %v384 = vunpack.c.l.b16 %v287
    %v385 = vunpack.c.l.b16 %v288
    %v386 = vunpack.c.l.b16 %v289
    %v387 = vunpack.c.l.b16 %v290
    %v388 = vunpack.c.l.b16 %v291
    %v389 = vunpack.c.l.b16 %v292
    %v390 = vunpack.c.l.b16 %v293
    %v391 = vunpack.c.l.b16 %v294
    %v392 = vunpack.c.l.b16 %v295
    %v393 = vpack.c.b16 %v349, %v348
    %v394 = vpack.c.b16 %v351, %v350
    %v395 = vpack.c.b16 %v353, %v352
    %v396 = vpack.c.b16 %v355, %v354
    %v397 = vpack.c.b16 %v357, %v356
    %v398 = vpack.c.b16 %v359, %v358
    %v399 = vpack.c.b16 %v361, %v360
    %v400 = vpack.c.b16 %v363, %v362
    %v401 = vpack.c.b16 %v365, %v364
    %v402 = vpack.c.b16 %v367, %v366
    %v403 = vpack.c.b16 %v369, %v368
    %v404 = vpack.c.b16 %v371, %v370
    %v405 = vpack.c.b16 %v373, %v372
    %v406 = vpack.c.b16 %v375, %v374
    %v407 = vpack.c.b16 %v377, %v376
    %v408 = vpack.c.b16 %v379, %v378
    %v409 = vpack.c.b16 %v381, %v380
    %v410 = vpack.c.b16 %v383, %v382
    %v411 = vpack.c.b16 %v385, %v384
    %v412 = vpack.c.b16 %v387, %v386
    %v413 = vpack.c.b16 %v389, %v388
    %v414 = vpack.c.b16 %v391, %v390
    %v415 = vpack.c.b16 %v392, %v392
    %vm438 = vcmask 850944
    %v440 = vsel %vm438, %v181, 0
    %v443 = vsel %vm438, %v184, 0
    %v446 = vsel %vm438, %v187, 0
    %v449 = vsel %vm438, %v190, 0
    %v452 = vsel %vm438, %v193, 0
    %v455 = vsel %vm438, %v196, 0
    %v458 = vsel %vm438, %v199, 0
    %v461 = vsel %vm438, %v202, 0
    %v464 = vsel %vm438, %v205, 0
    %v467 = vsel %vm438, %v208, 0
    %v470 = vsel %vm438, %v211, 0
    %v473 = vsel %vm438, %v214, 0
    %v476 = vsel %vm438, %v217, 0
    %v479 = vsel %vm438, %v220, 0
    %v482 = vsel %vm438, %v223, 0
    %v485 = vsel %vm438, %v226, 0
    %v488 = vsel %vm438, %v229, 0
    %v491 = vsel %vm438, %v232, 0
    %v494 = vsel %vm438, %v235, 0
    %v497 = vsel %vm438, %v238, 0
    %v500 = vsel %vm438, %v241, 0
    %v503 = vsel %vm438, %v244, 0
    %v506 = vsel %vm438, %v247, 0
    %v509 = vsel %vm438, %v250, 0
    %vm511 = vcmask 1043456
    %v513 = vsel %vm511, %v415, 0
    %515 = vmatprep.subr.bf16.mxu0 0
    %516 = vmatpush1.bf16.msra.mxu0 %v393
    %517 = vmatprep.subr.bf16.mxu0 0
    %518 = vmatpush1.bf16.msra.mxu0 %v394
    %519 = vmatprep.subr.bf16.mxu0 0
    %520 = vmatpush1.bf16.msra.mxu0 %v395
    %521 = vmatprep.subr.bf16.mxu0 0
    %522 = vmatpush1.bf16.msra.mxu0 %v396
    %523 = vmatprep.subr.bf16.mxu0 0
    %524 = vmatpush1.bf16.msra.mxu0 %v397
    %525 = vmatprep.subr.bf16.mxu0 0
    %526 = vmatpush1.bf16.msra.mxu0 %v398
    %527 = vmatprep.subr.bf16.mxu0 0
    %528 = vmatpush1.bf16.msra.mxu0 %v399
    %529 = vmatprep.subr.bf16.mxu0 0
    %530 = vmatpush1.bf16.msra.mxu0 %v400
    %531 = vmatprep.subr.bf16.mxu0 0
    %532 = vmatpush1.bf16.msra.mxu0 %v401
    %533 = vmatprep.subr.bf16.mxu0 0
    %534 = vmatpush1.bf16.msra.mxu0 %v402
    %535 = vmatprep.subr.bf16.mxu0 0
    %536 = vmatpush1.bf16.msra.mxu0 %v403
    %537 = vmatprep.subr.bf16.mxu0 0
    %538 = vmatpush1.bf16.msra.mxu0 %v404
    %539 = vmatprep.subr.bf16.mxu0 0
    %540 = vmatpush1.bf16.msra.mxu0 %v405
    %541 = vmatprep.subr.bf16.mxu0 0
    %542 = vmatpush1.bf16.msra.mxu0 %v406
    %543 = vmatprep.subr.bf16.mxu0 0
    %544 = vmatpush1.bf16.msra.mxu0 %v407
    %545 = vmatprep.subr.bf16.mxu0 0
    %546 = vmatpush1.bf16.msra.mxu0 %v408
    %547 = vmatprep.mubr.bf16.mxu0 %v180
    %548 = vmatmul.mubr.bf16.gmra.mrb[0].mxu0 %v179
    %v549 = vpop.f32.mrb[0].mxu0
    %v550 = vadd.f32 %v301, %v549
    %v551 = vpop.f32.mrb[0].mxu0
    %v552 = vpop.f32.mrb[0].mxu0
    %v553 = vadd.f32 %v301, %v552
    %v554 = vpop.f32.mrb[0].mxu0
    %555 = vmatprep.mubr.bf16.mxu0 %v183
    %556 = vmatmul.mubr.bf16.gmra.mrb[0].mxu0 %v182
    %v557 = vpop.f32.mrb[0].mxu0
    %v558 = vadd.f32 %v301, %v557
    %v559 = vpop.f32.mrb[0].mxu0
    %v560 = vpop.f32.mrb[0].mxu0
    %v561 = vadd.f32 %v301, %v560
    %v562 = vpop.f32.mrb[0].mxu0
    %563 = vmatprep.mubr.bf16.mxu0 %v186
    %564 = vmatmul.mubr.bf16.gmra.mrb[0].mxu0 %v185
    %v565 = vpop.f32.mrb[0].mxu0
    %v566 = vadd.f32 %v301, %v565
    %v567 = vpop.f32.mrb[0].mxu0
    %v568 = vpop.f32.mrb[0].mxu0
    %v569 = vadd.f32 %v301, %v568
    %v570 = vpop.f32.mrb[0].mxu0
    %571 = vmatprep.mubr.bf16.mxu0 %v189
    %572 = vmatmul.mubr.bf16.gmra.mrb[0].mxu0 %v188
    %v573 = vpop.f32.mrb[0].mxu0
    %v574 = vadd.f32 %v301, %v573
    %v575 = vpop.f32.mrb[0].mxu0
    %v576 = vpop.f32.mrb[0].mxu0
    %v577 = vadd.f32 %v301, %v576
    %v578 = vpop.f32.mrb[0].mxu0
    %579 = vmatprep.mubr.bf16.mxu0 %v192
    %580 = vmatmul.mubr.bf16.gmra.mrb[0].mxu0 %v191
    %v581 = vpop.f32.mrb[0].mxu0
    %v582 = vadd.f32 %v301, %v581
    %v583 = vpop.f32.mrb[0].mxu0
    %v584 = vpop.f32.mrb[0].mxu0
    %v585 = vadd.f32 %v301, %v584
    %v586 = vpop.f32.mrb[0].mxu0
    %587 = vmatprep.mubr.bf16.mxu0 %v195
    %588 = vmatmul.mubr.bf16.gmra.mrb[0].mxu0 %v194
    %v589 = vpop.f32.mrb[0].mxu0
    %v590 = vadd.f32 %v301, %v589
    %v591 = vpop.f32.mrb[0].mxu0
    %v592 = vpop.f32.mrb[0].mxu0
    %v593 = vadd.f32 %v301, %v592
    %v594 = vpop.f32.mrb[0].mxu0
    %595 = vmatprep.mubr.bf16.mxu0 %v198
    %596 = vmatmul.mubr.bf16.gmra.mrb[0].mxu0 %v197
    %v597 = vpop.f32.mrb[0].mxu0
    %v598 = vadd.f32 %v301, %v597
    %v599 = vpop.f32.mrb[0].mxu0
    %v600 = vpop.f32.mrb[0].mxu0
    %v601 = vadd.f32 %v301, %v600
    %v602 = vpop.f32.mrb[0].mxu0
    %603 = vmatprep.mubr.bf16.mxu0 %v201
    %604 = vmatmul.mubr.bf16.gmra.mrb[0].mxu0 %v200
    %v605 = vpop.f32.mrb[0].mxu0
    %v606 = vadd.f32 %v301, %v605
    %v607 = vpop.f32.mrb[0].mxu0
    %v608 = vpop.f32.mrb[0].mxu0
    %v609 = vadd.f32 %v301, %v608
    %v610 = vpop.f32.mrb[0].mxu0
    %611 = vmatprep.mubr.bf16.mxu0 %v204
    %612 = vmatmul.mubr.bf16.gmra.mrb[0].mxu0 %v203
    %v613 = vpop.f32.mrb[0].mxu0
    %v614 = vadd.f32 %v301, %v613
    %v615 = vpop.f32.mrb[0].mxu0
    %v616 = vpop.f32.mrb[0].mxu0
    %v617 = vadd.f32 %v301, %v616
    %v618 = vpop.f32.mrb[0].mxu0
    %619 = vmatprep.mubr.bf16.mxu0 %v207
    %620 = vmatmul.mubr.bf16.gmra.mrb[0].mxu0 %v206
    %v621 = vpop.f32.mrb[0].mxu0
    %v622 = vadd.f32 %v301, %v621
    %v623 = vpop.f32.mrb[0].mxu0
    %v624 = vpop.f32.mrb[0].mxu0
    %v625 = vadd.f32 %v301, %v624
    %v626 = vpop.f32.mrb[0].mxu0
    %627 = vmatprep.mubr.bf16.mxu0 %v210
    %628 = vmatmul.mubr.bf16.gmra.mrb[0].mxu0 %v209
    %v629 = vpop.f32.mrb[0].mxu0
    %v630 = vadd.f32 %v301, %v629
    %v631 = vpop.f32.mrb[0].mxu0
    %v632 = vpop.f32.mrb[0].mxu0
    %v633 = vadd.f32 %v301, %v632
    %v634 = vpop.f32.mrb[0].mxu0
    %635 = vmatprep.mubr.bf16.mxu0 %v213
    %636 = vmatmul.mubr.bf16.gmra.mrb[0].mxu0 %v212
    %v637 = vpop.f32.mrb[0].mxu0
    %v638 = vadd.f32 %v301, %v637
    %v639 = vpop.f32.mrb[0].mxu0
    %v640 = vpop.f32.mrb[0].mxu0
    %v641 = vadd.f32 %v301, %v640
    %v642 = vpop.f32.mrb[0].mxu0
    %643 = vmatprep.mubr.bf16.mxu0 %v216
    %644 = vmatmul.mubr.bf16.gmra.mrb[0].mxu0 %v215
    %v645 = vpop.f32.mrb[0].mxu0
    %v646 = vadd.f32 %v301, %v645
    %v647 = vpop.f32.mrb[0].mxu0
    %v648 = vpop.f32.mrb[0].mxu0
    %v649 = vadd.f32 %v301, %v648
    %v650 = vpop.f32.mrb[0].mxu0
    %651 = vmatprep.mubr.bf16.mxu0 %v219
    %652 = vmatmul.mubr.bf16.gmra.mrb[0].mxu0 %v218
    %v653 = vpop.f32.mrb[0].mxu0
    %v654 = vadd.f32 %v301, %v653
    %v655 = vpop.f32.mrb[0].mxu0
    %v656 = vpop.f32.mrb[0].mxu0
    %v657 = vadd.f32 %v301, %v656
    %v658 = vpop.f32.mrb[0].mxu0
    %659 = vmatprep.mubr.bf16.mxu0 %v222
    %660 = vmatmul.mubr.bf16.gmra.mrb[0].mxu0 %v221
    %v661 = vpop.f32.mrb[0].mxu0
    %v662 = vadd.f32 %v301, %v661
    %v663 = vpop.f32.mrb[0].mxu0
    %v664 = vpop.f32.mrb[0].mxu0
    %v665 = vadd.f32 %v301, %v664
    %v666 = vpop.f32.mrb[0].mxu0
    %667 = vmatprep.mubr.bf16.mxu0 %v225
    %668 = vmatmul.mubr.bf16.gmra.mrb[0].mxu0 %v224
    %v669 = vpop.f32.mrb[0].mxu0
    %v670 = vadd.f32 %v301, %v669
    %v671 = vpop.f32.mrb[0].mxu0
    %v672 = vpop.f32.mrb[0].mxu0
    %v673 = vadd.f32 %v301, %v672
    %v674 = vpop.f32.mrb[0].mxu0
    %675 = vmatprep.mubr.bf16.mxu0 %v228
    %676 = vmatmul.mubr.bf16.gmra.mrb[0].mxu0 %v227
    %v677 = vpop.f32.mrb[0].mxu0
    %v678 = vadd.f32 %v301, %v677
    %v679 = vpop.f32.mrb[0].mxu0
    %v680 = vpop.f32.mrb[0].mxu0
    %v681 = vadd.f32 %v301, %v680
    %v682 = vpop.f32.mrb[0].mxu0
    %683 = vmatprep.mubr.bf16.mxu0 %v231
    %684 = vmatmul.mubr.bf16.gmra.mrb[0].mxu0 %v230
    %v685 = vpop.f32.mrb[0].mxu0
    %v686 = vadd.f32 %v301, %v685
    %v687 = vpop.f32.mrb[0].mxu0
    %v688 = vpop.f32.mrb[0].mxu0
    %v689 = vadd.f32 %v301, %v688
    %v690 = vpop.f32.mrb[0].mxu0
    %691 = vmatprep.mubr.bf16.mxu0 %v234
    %692 = vmatmul.mubr.bf16.gmra.mrb[0].mxu0 %v233
    %v693 = vpop.f32.mrb[0].mxu0
    %v694 = vadd.f32 %v301, %v693
    %v695 = vpop.f32.mrb[0].mxu0
    %v696 = vpop.f32.mrb[0].mxu0
    %v697 = vadd.f32 %v301, %v696
    %v698 = vpop.f32.mrb[0].mxu0
    %699 = vmatprep.mubr.bf16.mxu0 %v237
    %700 = vmatmul.mubr.bf16.gmra.mrb[0].mxu0 %v236
    %v701 = vpop.f32.mrb[0].mxu0
    %v702 = vadd.f32 %v301, %v701
    %v703 = vpop.f32.mrb[0].mxu0
    %v704 = vpop.f32.mrb[0].mxu0
    %v705 = vadd.f32 %v301, %v704
    %v706 = vpop.f32.mrb[0].mxu0
    %707 = vmatprep.mubr.bf16.mxu0 %v240
    %708 = vmatmul.mubr.bf16.gmra.mrb[0].mxu0 %v239
    %v709 = vpop.f32.mrb[0].mxu0
    %v710 = vadd.f32 %v301, %v709
    %v711 = vpop.f32.mrb[0].mxu0
    %v712 = vpop.f32.mrb[0].mxu0
    %v713 = vadd.f32 %v301, %v712
    %v714 = vpop.f32.mrb[0].mxu0
    %715 = vmatprep.mubr.bf16.mxu0 %v243
    %716 = vmatmul.mubr.bf16.gmra.mrb[0].mxu0 %v242
    %v717 = vpop.f32.mrb[0].mxu0
    %v718 = vadd.f32 %v301, %v717
    %v719 = vpop.f32.mrb[0].mxu0
    %v720 = vpop.f32.mrb[0].mxu0
    %v721 = vadd.f32 %v301, %v720
    %v722 = vpop.f32.mrb[0].mxu0
    %723 = vmatprep.mubr.bf16.mxu0 %v246
    %724 = vmatmul.mubr.bf16.gmra.mrb[0].mxu0 %v245
    %v725 = vpop.f32.mrb[0].mxu0
    %v726 = vadd.f32 %v301, %v725
    %v727 = vpop.f32.mrb[0].mxu0
    %v728 = vpop.f32.mrb[0].mxu0
    %v729 = vadd.f32 %v301, %v728
    %v730 = vpop.f32.mrb[0].mxu0
    %731 = vmatprep.mubr.bf16.mxu0 %v249
    %732 = vmatmul.mubr.bf16.gmra.mrb[0].mxu0 %v248
    %v733 = vpop.f32.mrb[0].mxu0
    %v734 = vadd.f32 %v301, %v733
    %v735 = vpop.f32.mrb[0].mxu0
    %v736 = vpop.f32.mrb[0].mxu0
    %v737 = vadd.f32 %v301, %v736
    %v738 = vpop.f32.mrb[0].mxu0
    %739 = vdwg.mxu0
    %740 = vmatprep.subr.bf16.mxu0 0
    %741 = vmatpush1.bf16.msra.mxu0 %v409
    %742 = vmatprep.subr.bf16.mxu0 0
    %743 = vmatpush1.bf16.msra.mxu0 %v410
    %744 = vmatprep.subr.bf16.mxu0 0
    %745 = vmatpush1.bf16.msra.mxu0 %v411
    %746 = vmatprep.subr.bf16.mxu0 0
    %747 = vmatpush1.bf16.msra.mxu0 %v412
    %748 = vmatprep.subr.bf16.mxu0 0
    %749 = vmatpush1.bf16.msra.mxu0 %v413
    %750 = vmatprep.subr.bf16.mxu0 0
    %751 = vmatpush1.bf16.msra.mxu0 %v414
    %752 = vmatprep.subr.bf16.mxu0 0
    %753 = vmatpush1.bf16.msra.mxu0 %v513
    %754 = vmatprep.subr.bf16.mxu0 0
    %755 = vmatpush1.bf16.msra.mxu0 0
    %756 = vmatprep.subr.bf16.mxu0 0
    %757 = vmatpush1.bf16.msra.mxu0 0
    %758 = vmatprep.subr.bf16.mxu0 0
    %759 = vmatpush1.bf16.msra.mxu0 0
    %760 = vmatprep.subr.bf16.mxu0 0
    %761 = vmatpush1.bf16.msra.mxu0 0
    %762 = vmatprep.subr.bf16.mxu0 0
    %763 = vmatpush1.bf16.msra.mxu0 0
    %764 = vmatprep.subr.bf16.mxu0 0
    %765 = vmatpush1.bf16.msra.mxu0 0
    %766 = vmatprep.subr.bf16.mxu0 0
    %767 = vmatpush1.bf16.msra.mxu0 0
    %768 = vmatprep.subr.bf16.mxu0 0
    %769 = vmatpush1.bf16.msra.mxu0 0
    %770 = vmatprep.subr.bf16.mxu0 0
    %771 = vmatpush1.bf16.msra.mxu0 0
    %772 = vmatprep.mubr.bf16.mxu0 0
    %773 = vmatmul.mubr.bf16.gmra.mrb[0].mxu0 %v440
    %v774 = vpop.f32.mrb[0].mxu0
    %v775 = vadd.f32 %v550, %v774
    %v776 = vpop.f32.mrb[0].mxu0
    %v777 = vpop.f32.mrb[0].mxu0
    %v778 = vadd.f32 %v553, %v777
    %v779 = vpop.f32.mrb[0].mxu0
    %780 = vmatprep.mubr.bf16.mxu0 0
    %781 = vmatmul.mubr.bf16.gmra.mrb[0].mxu0 %v443
    %v782 = vpop.f32.mrb[0].mxu0
    %v783 = vadd.f32 %v558, %v782
    %v784 = vpop.f32.mrb[0].mxu0
    %v785 = vpop.f32.mrb[0].mxu0
    %v786 = vadd.f32 %v561, %v785
    %v787 = vpop.f32.mrb[0].mxu0
    %788 = vmatprep.mubr.bf16.mxu0 0
    %789 = vmatmul.mubr.bf16.gmra.mrb[0].mxu0 %v446
    %v790 = vpop.f32.mrb[0].mxu0
    %v791 = vadd.f32 %v566, %v790
    %v792 = vpop.f32.mrb[0].mxu0
    %v793 = vpop.f32.mrb[0].mxu0
    %v794 = vadd.f32 %v569, %v793
    %v795 = vpop.f32.mrb[0].mxu0
    %796 = vmatprep.mubr.bf16.mxu0 0
    %797 = vmatmul.mubr.bf16.gmra.mrb[0].mxu0 %v449
    %v798 = vpop.f32.mrb[0].mxu0
    %v799 = vadd.f32 %v574, %v798
    %v800 = vpop.f32.mrb[0].mxu0
    %v801 = vpop.f32.mrb[0].mxu0
    %v802 = vadd.f32 %v577, %v801
    %v803 = vpop.f32.mrb[0].mxu0
    %804 = vmatprep.mubr.bf16.mxu0 0
    %805 = vmatmul.mubr.bf16.gmra.mrb[0].mxu0 %v452
    %v806 = vpop.f32.mrb[0].mxu0
    %v807 = vadd.f32 %v582, %v806
    %v808 = vpop.f32.mrb[0].mxu0
    %v809 = vpop.f32.mrb[0].mxu0
    %v810 = vadd.f32 %v585, %v809
    %v811 = vpop.f32.mrb[0].mxu0
    %812 = vmatprep.mubr.bf16.mxu0 0
    %813 = vmatmul.mubr.bf16.gmra.mrb[0].mxu0 %v455
    %v814 = vpop.f32.mrb[0].mxu0
    %v815 = vadd.f32 %v590, %v814
    %v816 = vpop.f32.mrb[0].mxu0
    %v817 = vpop.f32.mrb[0].mxu0
    %v818 = vadd.f32 %v593, %v817
    %v819 = vpop.f32.mrb[0].mxu0
    %820 = vmatprep.mubr.bf16.mxu0 0
    %821 = vmatmul.mubr.bf16.gmra.mrb[0].mxu0 %v458
    %v822 = vpop.f32.mrb[0].mxu0
    %v823 = vadd.f32 %v598, %v822
    %v824 = vpop.f32.mrb[0].mxu0
    %v825 = vpop.f32.mrb[0].mxu0
    %v826 = vadd.f32 %v601, %v825
    %v827 = vpop.f32.mrb[0].mxu0
    %828 = vmatprep.mubr.bf16.mxu0 0
    %829 = vmatmul.mubr.bf16.gmra.mrb[0].mxu0 %v461
    %v830 = vpop.f32.mrb[0].mxu0
    %v831 = vadd.f32 %v606, %v830
    %v832 = vpop.f32.mrb[0].mxu0
    %v833 = vpop.f32.mrb[0].mxu0
    %v834 = vadd.f32 %v609, %v833
    %v835 = vpop.f32.mrb[0].mxu0
    %836 = vmatprep.mubr.bf16.mxu0 0
    %837 = vmatmul.mubr.bf16.gmra.mrb[0].mxu0 %v464
    %v838 = vpop.f32.mrb[0].mxu0
    %v839 = vadd.f32 %v614, %v838
    %v840 = vpop.f32.mrb[0].mxu0
    %v841 = vpop.f32.mrb[0].mxu0
    %v842 = vadd.f32 %v617, %v841
    %v843 = vpop.f32.mrb[0].mxu0
    %844 = vmatprep.mubr.bf16.mxu0 0
    %845 = vmatmul.mubr.bf16.gmra.mrb[0].mxu0 %v467
    %v846 = vpop.f32.mrb[0].mxu0
    %v847 = vadd.f32 %v622, %v846
    %v848 = vpop.f32.mrb[0].mxu0
    %v849 = vpop.f32.mrb[0].mxu0
    %v850 = vadd.f32 %v625, %v849
    %v851 = vpop.f32.mrb[0].mxu0
    %852 = vmatprep.mubr.bf16.mxu0 0
    %853 = vmatmul.mubr.bf16.gmra.mrb[0].mxu0 %v470
    %v854 = vpop.f32.mrb[0].mxu0
    %v855 = vadd.f32 %v630, %v854
    %v856 = vpop.f32.mrb[0].mxu0
    %v857 = vpop.f32.mrb[0].mxu0
    %v858 = vadd.f32 %v633, %v857
    %v859 = vpop.f32.mrb[0].mxu0
    %860 = vmatprep.mubr.bf16.mxu0 0
    %861 = vmatmul.mubr.bf16.gmra.mrb[0].mxu0 %v473
    %v862 = vpop.f32.mrb[0].mxu0
    %v863 = vadd.f32 %v638, %v862
    %v864 = vpop.f32.mrb[0].mxu0
    %v865 = vpop.f32.mrb[0].mxu0
    %v866 = vadd.f32 %v641, %v865
    %v867 = vpop.f32.mrb[0].mxu0
    %868 = vmatprep.mubr.bf16.mxu0 0
    %869 = vmatmul.mubr.bf16.gmra.mrb[0].mxu0 %v476
    %v870 = vpop.f32.mrb[0].mxu0
    %v871 = vadd.f32 %v646, %v870
    %v872 = vpop.f32.mrb[0].mxu0
    %v873 = vpop.f32.mrb[0].mxu0
    %v874 = vadd.f32 %v649, %v873
    %v875 = vpop.f32.mrb[0].mxu0
    %876 = vmatprep.mubr.bf16.mxu0 0
    %877 = vmatmul.mubr.bf16.gmra.mrb[0].mxu0 %v479
    %v878 = vpop.f32.mrb[0].mxu0
    %v879 = vadd.f32 %v654, %v878
    %v880 = vpop.f32.mrb[0].mxu0
    %v881 = vpop.f32.mrb[0].mxu0
    %v882 = vadd.f32 %v657, %v881
    %v883 = vpop.f32.mrb[0].mxu0
    %884 = vmatprep.mubr.bf16.mxu0 0
    %885 = vmatmul.mubr.bf16.gmra.mrb[0].mxu0 %v482
    %v886 = vpop.f32.mrb[0].mxu0
    %v887 = vadd.f32 %v662, %v886
    %v888 = vpop.f32.mrb[0].mxu0
    %v889 = vpop.f32.mrb[0].mxu0
    %v890 = vadd.f32 %v665, %v889
    %v891 = vpop.f32.mrb[0].mxu0
    %892 = vmatprep.mubr.bf16.mxu0 0
    %893 = vmatmul.mubr.bf16.gmra.mrb[0].mxu0 %v485
    %v894 = vpop.f32.mrb[0].mxu0
    %v895 = vadd.f32 %v670, %v894
    %v896 = vpop.f32.mrb[0].mxu0
    %v897 = vpop.f32.mrb[0].mxu0
    %v898 = vadd.f32 %v673, %v897
    %v899 = vpop.f32.mrb[0].mxu0
    %900 = vmatprep.mubr.bf16.mxu0 0
    %901 = vmatmul.mubr.bf16.gmra.mrb[0].mxu0 %v488
    %v902 = vpop.f32.mrb[0].mxu0
    %v903 = vadd.f32 %v678, %v902
    %v904 = vpop.f32.mrb[0].mxu0
    %v905 = vpop.f32.mrb[0].mxu0
    %v906 = vadd.f32 %v681, %v905
    %v907 = vpop.f32.mrb[0].mxu0
    %908 = vmatprep.mubr.bf16.mxu0 0
    %909 = vmatmul.mubr.bf16.gmra.mrb[0].mxu0 %v491
    %v910 = vpop.f32.mrb[0].mxu0
    %v911 = vadd.f32 %v686, %v910
    %v912 = vpop.f32.mrb[0].mxu0
    %v913 = vpop.f32.mrb[0].mxu0
    %v914 = vadd.f32 %v689, %v913
    %v915 = vpop.f32.mrb[0].mxu0
    %916 = vmatprep.mubr.bf16.mxu0 0
    %917 = vmatmul.mubr.bf16.gmra.mrb[0].mxu0 %v494
    %v918 = vpop.f32.mrb[0].mxu0
    %v919 = vadd.f32 %v694, %v918
    %v920 = vpop.f32.mrb[0].mxu0
    %v921 = vpop.f32.mrb[0].mxu0
    %v922 = vadd.f32 %v697, %v921
    %v923 = vpop.f32.mrb[0].mxu0
    %924 = vmatprep.mubr.bf16.mxu0 0
    %925 = vmatmul.mubr.bf16.gmra.mrb[0].mxu0 %v497
    %v926 = vpop.f32.mrb[0].mxu0
    %v927 = vadd.f32 %v702, %v926
    %v928 = vpop.f32.mrb[0].mxu0
    %v929 = vpop.f32.mrb[0].mxu0
    %v930 = vadd.f32 %v705, %v929
    %v931 = vpop.f32.mrb[0].mxu0
    %932 = vmatprep.mubr.bf16.mxu0 0
    %933 = vmatmul.mubr.bf16.gmra.mrb[0].mxu0 %v500
    %v934 = vpop.f32.mrb[0].mxu0
    %v935 = vadd.f32 %v710, %v934
    %v936 = vpop.f32.mrb[0].mxu0
    %v937 = vpop.f32.mrb[0].mxu0
    %v938 = vadd.f32 %v713, %v937
    %v939 = vpop.f32.mrb[0].mxu0
    %940 = vmatprep.mubr.bf16.mxu0 0
    %941 = vmatmul.mubr.bf16.gmra.mrb[0].mxu0 %v503
    %v942 = vpop.f32.mrb[0].mxu0
    %v943 = vadd.f32 %v718, %v942
    %v944 = vpop.f32.mrb[0].mxu0
    %v945 = vpop.f32.mrb[0].mxu0
    %v946 = vadd.f32 %v721, %v945
    %v947 = vpop.f32.mrb[0].mxu0
    %948 = vmatprep.mubr.bf16.mxu0 0
    %949 = vmatmul.mubr.bf16.gmra.mrb[0].mxu0 %v506
    %v950 = vpop.f32.mrb[0].mxu0
    %v951 = vadd.f32 %v726, %v950
    %v952 = vpop.f32.mrb[0].mxu0
    %v953 = vpop.f32.mrb[0].mxu0
    %v954 = vadd.f32 %v729, %v953
    %v955 = vpop.f32.mrb[0].mxu0
    %956 = vmatprep.mubr.bf16.mxu0 0
    %957 = vmatmul.mubr.bf16.gmra.mrb[0].mxu0 %v509
    %v958 = vpop.f32.mrb[0].mxu0
    %v959 = vadd.f32 %v734, %v958
    %v960 = vpop.f32.mrb[0].mxu0
    %v961 = vpop.f32.mrb[0].mxu0
    %v962 = vadd.f32 %v737, %v961
    %v963 = vpop.f32.mrb[0].mxu0
    %964 = vdwg.mxu0
    %vm965 = vcmp.gt.f32.partialorder %v775, 0.0
    %vm966 = vcmp.gt.f32.partialorder %v778, 0.0
    %vm967 = vcmp.gt.f32.partialorder %v783, 0.0
    %vm968 = vcmp.gt.f32.partialorder %v786, 0.0
    %vm969 = vcmp.gt.f32.partialorder %v791, 0.0
    %vm970 = vcmp.gt.f32.partialorder %v794, 0.0
    %vm971 = vcmp.gt.f32.partialorder %v799, 0.0
    %vm972 = vcmp.gt.f32.partialorder %v802, 0.0
    %vm973 = vcmp.gt.f32.partialorder %v807, 0.0
    %vm974 = vcmp.gt.f32.partialorder %v810, 0.0
    %vm975 = vcmp.gt.f32.partialorder %v815, 0.0
    %vm976 = vcmp.gt.f32.partialorder %v818, 0.0
    %vm977 = vcmp.gt.f32.partialorder %v823, 0.0
    %vm978 = vcmp.gt.f32.partialorder %v826, 0.0
    %vm979 = vcmp.gt.f32.partialorder %v831, 0.0
    %vm980 = vcmp.gt.f32.partialorder %v834, 0.0
    %vm981 = vcmp.gt.f32.partialorder %v839, 0.0
    %vm982 = vcmp.gt.f32.partialorder %v842, 0.0
    %vm983 = vcmp.gt.f32.partialorder %v847, 0.0
    %vm984 = vcmp.gt.f32.partialorder %v850, 0.0
    %vm985 = vcmp.gt.f32.partialorder %v855, 0.0
    %vm986 = vcmp.gt.f32.partialorder %v858, 0.0
    %vm987 = vcmp.gt.f32.partialorder %v863, 0.0
    %vm988 = vcmp.gt.f32.partialorder %v866, 0.0
    %vm989 = vcmp.gt.f32.partialorder %v871, 0.0
    %vm990 = vcmp.gt.f32.partialorder %v874, 0.0
    %vm991 = vcmp.gt.f32.partialorder %v879, 0.0
    %vm992 = vcmp.gt.f32.partialorder %v882, 0.0
    %vm993 = vcmp.gt.f32.partialorder %v887, 0.0
    %vm994 = vcmp.gt.f32.partialorder %v890, 0.0
    %vm995 = vcmp.gt.f32.partialorder %v895, 0.0
    %vm996 = vcmp.gt.f32.partialorder %v898, 0.0
    %vm997 = vcmp.gt.f32.partialorder %v903, 0.0
    %vm998 = vcmp.gt.f32.partialorder %v906, 0.0
    %vm999 = vcmp.gt.f32.partialorder %v911, 0.0
    %vm1000 = vcmp.gt.f32.partialorder %v914, 0.0
    %vm1001 = vcmp.gt.f32.partialorder %v919, 0.0
    %vm1002 = vcmp.gt.f32.partialorder %v922, 0.0
    %vm1003 = vcmp.gt.f32.partialorder %v927, 0.0
    %vm1004 = vcmp.gt.f32.partialorder %v930, 0.0
    %vm1005 = vcmp.gt.f32.partialorder %v935, 0.0
    %vm1006 = vcmp.gt.f32.partialorder %v938, 0.0
    %vm1007 = vcmp.gt.f32.partialorder %v943, 0.0
    %vm1008 = vcmp.gt.f32.partialorder %v946, 0.0
    %vm1009 = vcmp.gt.f32.partialorder %v951, 0.0
    %vm1010 = vcmp.gt.f32.partialorder %v954, 0.0
    %vm1011 = vcmp.gt.f32.partialorder %v959, 0.0
    %vm1012 = vcmp.gt.f32.partialorder %v962, 0.0
    %v1013 = vmul.f32 %v775, 0.01
    %v1014 = vmul.f32 %v778, 0.01
    %v1015 = vmul.f32 %v783, 0.01
    %v1016 = vmul.f32 %v786, 0.01
    %v1017 = vmul.f32 %v791, 0.01
    %v1018 = vmul.f32 %v794, 0.01
    %v1019 = vmul.f32 %v799, 0.01
    %v1020 = vmul.f32 %v802, 0.01
    %v1021 = vmul.f32 %v807, 0.01
    %v1022 = vmul.f32 %v810, 0.01
    %v1023 = vmul.f32 %v815, 0.01
    %v1024 = vmul.f32 %v818, 0.01
    %v1025 = vmul.f32 %v823, 0.01
    %v1026 = vmul.f32 %v826, 0.01
    %v1027 = vmul.f32 %v831, 0.01
    %v1028 = vmul.f32 %v834, 0.01
    %v1029 = vmul.f32 %v839, 0.01
    %v1030 = vmul.f32 %v842, 0.01
    %v1031 = vmul.f32 %v847, 0.01
    %v1032 = vmul.f32 %v850, 0.01
    %v1033 = vmul.f32 %v855, 0.01
    %v1034 = vmul.f32 %v858, 0.01
    %v1035 = vmul.f32 %v863, 0.01
    %v1036 = vmul.f32 %v866, 0.01
    %v1037 = vmul.f32 %v871, 0.01
    %v1038 = vmul.f32 %v874, 0.01
    %v1039 = vmul.f32 %v879, 0.01
    %v1040 = vmul.f32 %v882, 0.01
    %v1041 = vmul.f32 %v887, 0.01
    %v1042 = vmul.f32 %v890, 0.01
    %v1043 = vmul.f32 %v895, 0.01
    %v1044 = vmul.f32 %v898, 0.01
    %v1045 = vmul.f32 %v903, 0.01
    %v1046 = vmul.f32 %v906, 0.01
    %v1047 = vmul.f32 %v911, 0.01
    %v1048 = vmul.f32 %v914, 0.01
    %v1049 = vmul.f32 %v919, 0.01
    %v1050 = vmul.f32 %v922, 0.01
    %v1051 = vmul.f32 %v927, 0.01
    %v1052 = vmul.f32 %v930, 0.01
    %v1053 = vmul.f32 %v935, 0.01
    %v1054 = vmul.f32 %v938, 0.01
    %v1055 = vmul.f32 %v943, 0.01
    %v1056 = vmul.f32 %v946, 0.01
    %v1057 = vmul.f32 %v951, 0.01
    %v1058 = vmul.f32 %v954, 0.01
    %v1059 = vmul.f32 %v959, 0.01
    %v1060 = vmul.f32 %v962, 0.01
    %v1061 = vsel %vm965, %v775, %v1013
    %v1062 = vsel %vm966, %v778, %v1014
    %v1063 = vsel %vm967, %v783, %v1015
    %v1064 = vsel %vm968, %v786, %v1016
    %v1065 = vsel %vm969, %v791, %v1017
    %v1066 = vsel %vm970, %v794, %v1018
    %v1067 = vsel %vm971, %v799, %v1019
    %v1068 = vsel %vm972, %v802, %v1020
    %v1069 = vsel %vm973, %v807, %v1021
    %v1070 = vsel %vm974, %v810, %v1022
    %v1071 = vsel %vm975, %v815, %v1023
    %v1072 = vsel %vm976, %v818, %v1024
    %v1073 = vsel %vm977, %v823, %v1025
    %v1074 = vsel %vm978, %v826, %v1026
    %v1075 = vsel %vm979, %v831, %v1027
    %v1076 = vsel %vm980, %v834, %v1028
    %v1077 = vsel %vm981, %v839, %v1029
    %v1078 = vsel %vm982, %v842, %v1030
    %v1079 = vsel %vm983, %v847, %v1031
    %v1080 = vsel %vm984, %v850, %v1032
    %v1081 = vsel %vm985, %v855, %v1033
    %v1082 = vsel %vm986, %v858, %v1034
    %v1083 = vsel %vm987, %v863, %v1035
    %v1084 = vsel %vm988, %v866, %v1036
    %v1085 = vsel %vm989, %v871, %v1037
    %v1086 = vsel %vm990, %v874, %v1038
    %v1087 = vsel %vm991, %v879, %v1039
    %v1088 = vsel %vm992, %v882, %v1040
    %v1089 = vsel %vm993, %v887, %v1041
    %v1090 = vsel %vm994, %v890, %v1042
    %v1091 = vsel %vm995, %v895, %v1043
    %v1092 = vsel %vm996, %v898, %v1044
    %v1093 = vsel %vm997, %v903, %v1045
    %v1094 = vsel %vm998, %v906, %v1046
    %v1095 = vsel %vm999, %v911, %v1047
    %v1096 = vsel %vm1000, %v914, %v1048
    %v1097 = vsel %vm1001, %v919, %v1049
    %v1098 = vsel %vm1002, %v922, %v1050
    %v1099 = vsel %vm1003, %v927, %v1051
    %v1100 = vsel %vm1004, %v930, %v1052
    %v1101 = vsel %vm1005, %v935, %v1053
    %v1102 = vsel %vm1006, %v938, %v1054
    %v1103 = vsel %vm1007, %v943, %v1055
    %v1104 = vsel %vm1008, %v946, %v1056
    %v1105 = vsel %vm1009, %v951, %v1057
    %v1106 = vsel %vm1010, %v954, %v1058
    %v1107 = vsel %vm1011, %v959, %v1059
    %v1108 = vsel %vm1012, %v962, %v1060
    %v1109 = vpack.c.bf16 %v1062, %v1061
    %v1110 = vpack.c.bf16 %v1064, %v1063
    %v1111 = vpack.c.bf16 %v1066, %v1065
    %v1112 = vpack.c.bf16 %v1068, %v1067
    %v1113 = vpack.c.bf16 %v1070, %v1069
    %v1114 = vpack.c.bf16 %v1072, %v1071
    %v1115 = vpack.c.bf16 %v1074, %v1073
    %v1116 = vpack.c.bf16 %v1076, %v1075
    %v1117 = vpack.c.bf16 %v1078, %v1077
    %v1118 = vpack.c.bf16 %v1080, %v1079
    %v1119 = vpack.c.bf16 %v1082, %v1081
    %v1120 = vpack.c.bf16 %v1084, %v1083
    %v1121 = vpack.c.bf16 %v1086, %v1085
    %v1122 = vpack.c.bf16 %v1088, %v1087
    %v1123 = vpack.c.bf16 %v1090, %v1089
    %v1124 = vpack.c.bf16 %v1092, %v1091
    %v1125 = vpack.c.bf16 %v1094, %v1093
    %v1126 = vpack.c.bf16 %v1096, %v1095
    %v1127 = vpack.c.bf16 %v1098, %v1097
    %v1128 = vpack.c.bf16 %v1100, %v1099
    %v1129 = vpack.c.bf16 %v1102, %v1101
    %v1130 = vpack.c.bf16 %v1104, %v1103
    %v1131 = vpack.c.bf16 %v1106, %v1105
    %v1132 = vpack.c.bf16 %v1108, %v1107
    %v1133 = vld [vmem:[%s6] sm:$0xff]
    %v1134 = vld [vmem:[%s6 + $0x8] sm:$0xff]
    %v1135 = vld [vmem:[%s6 + $0x10] sm:$0xff]
    %v1136 = vld [vmem:[%s6 + $0x18] sm:$0xff]
    %v1137 = vld [vmem:[%s6 + $0x20] sm:$0xff]
    %v1138 = vld [vmem:[%s6 + $0x28] sm:$0xff]
    %v1139 = vld [vmem:[%s6 + $0x30] sm:$0xff]
    %v1140 = vld [vmem:[%s6 + $0x38] sm:$0xff]
    %v1141 = vld [vmem:[%s6 + $0x40] sm:$0xff]
    %v1142 = vld [vmem:[%s6 + $0x48] sm:$0xff]
    %v1143 = vld [vmem:[%s6 + $0x50] sm:$0xff]
    %v1144 = vld [vmem:[%s6 + $0x58] sm:$0xff]
    %v1145 = vld [vmem:[%s6 + $0x60] sm:$0xff]
    %v1146 = vld [vmem:[%s6 + $0x68] sm:$0xff]
    %v1147 = vld [vmem:[%s6 + $0x70] sm:$0xff]
    %v1148 = vld [vmem:[%s6 + $0x78] sm:$0xff]
    %v1149 = vld [vmem:[%s3] sm:$0xf]
    %v1150 = vld [vmem:[%s3 + $0x4] sm:$0xf]
    %v1151 = vld [vmem:[%s3 + $0x8] sm:$0xf]
    %v1152 = vld [vmem:[%s3 + $0xc] sm:$0xf]
    %v1153 = vld [vmem:[%s3 + $0x10] sm:$0xf]
    %v1154 = vld [vmem:[%s3 + $0x14] sm:$0xf]
    %v1155 = vld [vmem:[%s3 + $0x18] sm:$0xf]
    %v1156 = vld [vmem:[%s3 + $0x1c] sm:$0xf]
    %1158 = vset.pattern.permute.xlu0 0
    %1159 = vperm.xlu0 %1158, %v1133
    %v1160 = vpop.permute.xlu0 %1159
    %1163 = vset.pattern.permute.xlu0 0
    %1164 = vperm.xlu0 %1163, %v1134
    %v1165 = vpop.permute.xlu0 %1164
    %1168 = vset.pattern.permute.xlu0 0
    %1169 = vperm.xlu0 %1168, %v1135
    %v1170 = vpop.permute.xlu0 %1169
    %1173 = vset.pattern.permute.xlu0 0
    %1174 = vperm.xlu0 %1173, %v1136
    %v1175 = vpop.permute.xlu0 %1174
    %1178 = vset.pattern.permute.xlu0 0
    %1179 = vperm.xlu0 %1178, %v1137
    %v1180 = vpop.permute.xlu0 %1179
    %1183 = vset.pattern.permute.xlu0 0
    %1184 = vperm.xlu0 %1183, %v1138
    %v1185 = vpop.permute.xlu0 %1184
    %1188 = vset.pattern.permute.xlu0 0
    %1189 = vperm.xlu0 %1188, %v1139
    %v1190 = vpop.permute.xlu0 %1189
    %1193 = vset.pattern.permute.xlu0 0
    %1194 = vperm.xlu0 %1193, %v1140
    %v1195 = vpop.permute.xlu0 %1194
    %v1205 = vunpack.c.l.b16 %v1149
    %v1206 = vunpack.c.l.b16 %v1150
    %v1207 = vunpack.c.l.b16 %v1151
    %v1208 = vunpack.c.l.b16 %v1152
    %v1209 = vunpack.c.l.b16 %v1153
    %v1210 = vunpack.c.l.b16 %v1154
    %v1211 = vunpack.c.l.b16 %v1155
    %v1212 = vunpack.c.l.b16 %v1156
    %v1213 = vpack.c.b16 %v1206, %v1205
    %v1214 = vpack.c.b16 %v1208, %v1207
    %v1215 = vpack.c.b16 %v1210, %v1209
    %v1216 = vpack.c.b16 %v1212, %v1211
    %vm1217 = vcmask 523264
    %v1219 = vsel %vm1217, %v1213, 0
    %v1222 = vsel %vm1217, %v1214, 0
    %v1225 = vsel %vm1217, %v1215, 0
    %v1228 = vsel %vm1217, %v1216, 0
    %v1231 = vsel %vm1217, %v1109, 0
    %v1234 = vsel %vm1217, %v1110, 0
    %v1237 = vsel %vm1217, %v1111, 0
    %v1240 = vsel %vm1217, %v1112, 0
    %v1243 = vsel %vm1217, %v1113, 0
    %v1246 = vsel %vm1217, %v1114, 0
    %v1249 = vsel %vm1217, %v1115, 0
    %v1252 = vsel %vm1217, %v1116, 0
    %v1255 = vsel %vm1217, %v1117, 0
    %v1258 = vsel %vm1217, %v1118, 0
    %v1261 = vsel %vm1217, %v1119, 0
    %v1264 = vsel %vm1217, %v1120, 0
    %v1267 = vsel %vm1217, %v1121, 0
    %v1270 = vsel %vm1217, %v1122, 0
    %v1273 = vsel %vm1217, %v1123, 0
    %v1276 = vsel %vm1217, %v1124, 0
    %v1279 = vsel %vm1217, %v1125, 0
    %v1282 = vsel %vm1217, %v1126, 0
    %v1285 = vsel %vm1217, %v1127, 0
    %v1288 = vsel %vm1217, %v1128, 0
    %v1291 = vsel %vm1217, %v1129, 0
    %v1294 = vsel %vm1217, %v1130, 0
    %v1297 = vsel %vm1217, %v1131, 0
    %v1300 = vsel %vm1217, %v1132, 0
    %1302 = vmatprep.subr.bf16.mxu0 0
    %1303 = vmatpush1.bf16.xpose.msra.mxu0 %v1231
    %1304 = vmatprep.subr.bf16.mxu0 0
    %1305 = vmatpush1.bf16.xpose.msra.mxu0 %v1234
    %1306 = vmatprep.subr.bf16.mxu0 0
    %1307 = vmatpush1.bf16.xpose.msra.mxu0 %v1237
    %1308 = vmatprep.subr.bf16.mxu0 0
    %1309 = vmatpush1.bf16.xpose.msra.mxu0 %v1240
    %1310 = vmatprep.subr.bf16.mxu0 0
    %1311 = vmatpush1.bf16.xpose.msra.mxu0 %v1243
    %1312 = vmatprep.subr.bf16.mxu0 0
    %1313 = vmatpush1.bf16.xpose.msra.mxu0 %v1246
    %1314 = vmatprep.subr.bf16.mxu0 0
    %1315 = vmatpush1.bf16.xpose.msra.mxu0 %v1249
    %1316 = vmatprep.subr.bf16.mxu0 0
    %1317 = vmatpush1.bf16.xpose.msra.mxu0 %v1252
    %1318 = vmatprep.subr.bf16.mxu0 0
    %1319 = vmatpush1.bf16.xpose.msra.mxu0 %v1255
    %1320 = vmatprep.subr.bf16.mxu0 0
    %1321 = vmatpush1.bf16.xpose.msra.mxu0 %v1258
    %1322 = vmatprep.subr.bf16.mxu0 0
    %1323 = vmatpush1.bf16.xpose.msra.mxu0 %v1261
    %1324 = vmatprep.subr.bf16.mxu0 0
    %1325 = vmatpush1.bf16.xpose.msra.mxu0 %v1264
    %1326 = vmatprep.subr.bf16.mxu0 0
    %1327 = vmatpush1.bf16.xpose.msra.mxu0 %v1267
    %1328 = vmatprep.subr.bf16.mxu0 0
    %1329 = vmatpush1.bf16.xpose.msra.mxu0 %v1270
    %1330 = vmatprep.subr.bf16.mxu0 0
    %1331 = vmatpush1.bf16.xpose.msra.mxu0 %v1273
    %1332 = vmatprep.subr.bf16.mxu0 0
    %1333 = vmatpush1.bf16.xpose.msra.mxu0 %v1276
    %1334 = vmatprep.mubr.bf16.mxu0 0
    %1335 = vmatmul.mubr.bf16.gmra.mrb[0].mxu0 %v1219
    %v1336 = vpop.f32.mrb[0].mxu0
    %v1337 = vadd.f32 %v1160, %v1336
    %v1338 = vpop.f32.mrb[0].mxu0
    %v1339 = vadd.f32 %v1160, %v1338
    %v1340 = vpop.f32.mrb[0].mxu0
    %v1341 = vadd.f32 %v1165, %v1340
    %v1342 = vpop.f32.mrb[0].mxu0
    %v1343 = vadd.f32 %v1165, %v1342
    %1344 = vmatprep.mubr.bf16.mxu0 0
    %1345 = vmatmul.mubr.bf16.gmra.mrb[0].mxu0 %v1222
    %v1346 = vpop.f32.mrb[0].mxu0
    %v1347 = vadd.f32 %v1170, %v1346
    %v1348 = vpop.f32.mrb[0].mxu0
    %v1349 = vadd.f32 %v1170, %v1348
    %v1350 = vpop.f32.mrb[0].mxu0
    %v1351 = vadd.f32 %v1175, %v1350
    %v1352 = vpop.f32.mrb[0].mxu0
    %v1353 = vadd.f32 %v1175, %v1352
    %1354 = vmatprep.mubr.bf16.mxu0 0
    %1355 = vmatmul.mubr.bf16.gmra.mrb[0].mxu0 %v1225
    %v1356 = vpop.f32.mrb[0].mxu0
    %v1357 = vadd.f32 %v1180, %v1356
    %v1358 = vpop.f32.mrb[0].mxu0
    %v1359 = vadd.f32 %v1180, %v1358
    %v1360 = vpop.f32.mrb[0].mxu0
    %v1361 = vadd.f32 %v1185, %v1360
    %v1362 = vpop.f32.mrb[0].mxu0
    %v1363 = vadd.f32 %v1185, %v1362
    %1364 = vmatprep.mubr.bf16.mxu0 0
    %1365 = vmatmul.mubr.bf16.gmra.mrb[0].mxu0 %v1228
    %v1366 = vpop.f32.mrb[0].mxu0
    %v1367 = vadd.f32 %v1190, %v1366
    %v1368 = vpop.f32.mrb[0].mxu0
    %v1369 = vadd.f32 %v1190, %v1368
    %v1370 = vpop.f32.mrb[0].mxu0
    %v1371 = vadd.f32 %v1195, %v1370
    %v1372 = vpop.f32.mrb[0].mxu0
    %v1373 = vadd.f32 %v1195, %v1372
    %1374 = vdwg.mxu0
    %1375 = vmatprep.subr.bf16.mxu0 0
    %1376 = vmatpush1.bf16.xpose.msra.mxu0 %v1279
    %1377 = vmatprep.subr.bf16.mxu0 0
    %1378 = vmatpush1.bf16.xpose.msra.mxu0 %v1282
    %1379 = vmatprep.subr.bf16.mxu0 0
    %1380 = vmatpush1.bf16.xpose.msra.mxu0 %v1285
    %1381 = vmatprep.subr.bf16.mxu0 0
    %1382 = vmatpush1.bf16.xpose.msra.mxu0 %v1288
    %1383 = vmatprep.subr.bf16.mxu0 0
    %1384 = vmatpush1.bf16.xpose.msra.mxu0 %v1291
    %1385 = vmatprep.subr.bf16.mxu0 0
    %1386 = vmatpush1.bf16.xpose.msra.mxu0 %v1294
    %1387 = vmatprep.subr.bf16.mxu0 0
    %1388 = vmatpush1.bf16.xpose.msra.mxu0 %v1297
    %1389 = vmatprep.subr.bf16.mxu0 0
    %1390 = vmatpush1.bf16.xpose.msra.mxu0 %v1300
    %1391 = vmatprep.subr.bf16.mxu0 0
    %1392 = vmatpush1.bf16.xpose.msra.mxu0 0
    %1393 = vmatprep.subr.bf16.mxu0 0
    %1394 = vmatpush1.bf16.xpose.msra.mxu0 0
    %1395 = vmatprep.subr.bf16.mxu0 0
    %1396 = vmatpush1.bf16.xpose.msra.mxu0 0
    %1397 = vmatprep.subr.bf16.mxu0 0
    %1398 = vmatpush1.bf16.xpose.msra.mxu0 0
    %1399 = vmatprep.subr.bf16.mxu0 0
    %1400 = vmatpush1.bf16.xpose.msra.mxu0 0
    %1401 = vmatprep.subr.bf16.mxu0 0
    %1402 = vmatpush1.bf16.xpose.msra.mxu0 0
    %1403 = vmatprep.subr.bf16.mxu0 0
    %1404 = vmatpush1.bf16.xpose.msra.mxu0 0
    %1405 = vmatprep.subr.bf16.mxu0 0
    %1406 = vmatpush1.bf16.xpose.msra.mxu0 0
    %1407 = vmatprep.mubr.bf16.mxu0 0
    %1408 = vmatmul.mubr.bf16.gmra.mrb[0].mxu0 %v1219
    %v1409 = vpop.f32.mrb[0].mxu0
    %v1410 = vadd.f32 %v1160, %v1409
    %v1411 = vpop.f32.mrb[0].mxu0
    %v1412 = vpop.f32.mrb[0].mxu0
    %v1413 = vadd.f32 %v1165, %v1412
    %v1414 = vpop.f32.mrb[0].mxu0
    %1415 = vmatprep.mubr.bf16.mxu0 0
    %1416 = vmatmul.mubr.bf16.gmra.mrb[0].mxu0 %v1222
    %v1417 = vpop.f32.mrb[0].mxu0
    %v1418 = vadd.f32 %v1170, %v1417
    %v1419 = vpop.f32.mrb[0].mxu0
    %v1420 = vpop.f32.mrb[0].mxu0
    %v1421 = vadd.f32 %v1175, %v1420
    %v1422 = vpop.f32.mrb[0].mxu0
    %1423 = vmatprep.mubr.bf16.mxu0 0
    %1424 = vmatmul.mubr.bf16.gmra.mrb[0].mxu0 %v1225
    %v1425 = vpop.f32.mrb[0].mxu0
    %v1426 = vadd.f32 %v1180, %v1425
    %v1427 = vpop.f32.mrb[0].mxu0
    %v1428 = vpop.f32.mrb[0].mxu0
    %v1429 = vadd.f32 %v1185, %v1428
    %v1430 = vpop.f32.mrb[0].mxu0
    %1431 = vmatprep.mubr.bf16.mxu0 0
    %1432 = vmatmul.mubr.bf16.gmra.mrb[0].mxu0 %v1228
    %v1433 = vpop.f32.mrb[0].mxu0
    %v1434 = vadd.f32 %v1190, %v1433
    %v1435 = vpop.f32.mrb[0].mxu0
    %v1436 = vpop.f32.mrb[0].mxu0
    %v1437 = vadd.f32 %v1195, %v1436
    %v1438 = vpop.f32.mrb[0].mxu0
    %1439 = vdwg.mxu0
    %vm1440 = vcmp.gt.f32.partialorder %v1337, 0.0
    %vm1441 = vcmp.gt.f32.partialorder %v1339, 0.0
    %vm1442 = vcmp.gt.f32.partialorder %v1410, 0.0
    %vm1443 = vcmp.gt.f32.partialorder %v1341, 0.0
    %vm1444 = vcmp.gt.f32.partialorder %v1343, 0.0
    %vm1445 = vcmp.gt.f32.partialorder %v1413, 0.0
    %vm1446 = vcmp.gt.f32.partialorder %v1347, 0.0
    %vm1447 = vcmp.gt.f32.partialorder %v1349, 0.0
    %vm1448 = vcmp.gt.f32.partialorder %v1418, 0.0
    %vm1449 = vcmp.gt.f32.partialorder %v1351, 0.0
    %vm1450 = vcmp.gt.f32.partialorder %v1353, 0.0
    %vm1451 = vcmp.gt.f32.partialorder %v1421, 0.0
    %vm1452 = vcmp.gt.f32.partialorder %v1357, 0.0
    %vm1453 = vcmp.gt.f32.partialorder %v1359, 0.0
    %vm1454 = vcmp.gt.f32.partialorder %v1426, 0.0
    %vm1455 = vcmp.gt.f32.partialorder %v1361, 0.0
    %vm1456 = vcmp.gt.f32.partialorder %v1363, 0.0
    %vm1457 = vcmp.gt.f32.partialorder %v1429, 0.0
    %vm1458 = vcmp.gt.f32.partialorder %v1367, 0.0
    %vm1459 = vcmp.gt.f32.partialorder %v1369, 0.0
    %vm1460 = vcmp.gt.f32.partialorder %v1434, 0.0
    %vm1461 = vcmp.gt.f32.partialorder %v1371, 0.0
    %vm1462 = vcmp.gt.f32.partialorder %v1373, 0.0
    %vm1463 = vcmp.gt.f32.partialorder %v1437, 0.0
    %v1464 = vmul.f32 %v1337, 0.01
    %v1465 = vmul.f32 %v1339, 0.01
    %v1466 = vmul.f32 %v1410, 0.01
    %v1467 = vmul.f32 %v1341, 0.01
    %v1468 = vmul.f32 %v1343, 0.01
    %v1469 = vmul.f32 %v1413, 0.01
    %v1470 = vmul.f32 %v1347, 0.01
    %v1471 = vmul.f32 %v1349, 0.01
    %v1472 = vmul.f32 %v1418, 0.01
    %v1473 = vmul.f32 %v1351, 0.01
    %v1474 = vmul.f32 %v1353, 0.01
    %v1475 = vmul.f32 %v1421, 0.01
    %v1476 = vmul.f32 %v1357, 0.01
    %v1477 = vmul.f32 %v1359, 0.01
    %v1478 = vmul.f32 %v1426, 0.01
    %v1479 = vmul.f32 %v1361, 0.01
    %v1480 = vmul.f32 %v1363, 0.01
    %v1481 = vmul.f32 %v1429, 0.01
    %v1482 = vmul.f32 %v1367, 0.01
    %v1483 = vmul.f32 %v1369, 0.01
    %v1484 = vmul.f32 %v1434, 0.01
    %v1485 = vmul.f32 %v1371, 0.01
    %v1486 = vmul.f32 %v1373, 0.01
    %v1487 = vmul.f32 %v1437, 0.01
    %v1488 = vsel %vm1440, %v1337, %v1464
    %v1489 = vsel %vm1441, %v1339, %v1465
    %v1490 = vsel %vm1442, %v1410, %v1466
    %v1491 = vsel %vm1443, %v1341, %v1467
    %v1492 = vsel %vm1444, %v1343, %v1468
    %v1493 = vsel %vm1445, %v1413, %v1469
    %v1494 = vsel %vm1446, %v1347, %v1470
    %v1495 = vsel %vm1447, %v1349, %v1471
    %v1496 = vsel %vm1448, %v1418, %v1472
    %v1497 = vsel %vm1449, %v1351, %v1473
    %v1498 = vsel %vm1450, %v1353, %v1474
    %v1499 = vsel %vm1451, %v1421, %v1475
    %v1500 = vsel %vm1452, %v1357, %v1476
    %v1501 = vsel %vm1453, %v1359, %v1477
    %v1502 = vsel %vm1454, %v1426, %v1478
    %v1503 = vsel %vm1455, %v1361, %v1479
    %v1504 = vsel %vm1456, %v1363, %v1480
    %v1505 = vsel %vm1457, %v1429, %v1481
    %v1506 = vsel %vm1458, %v1367, %v1482
    %v1507 = vsel %vm1459, %v1369, %v1483
    %v1508 = vsel %vm1460, %v1434, %v1484
    %v1509 = vsel %vm1461, %v1371, %v1485
    %v1510 = vsel %vm1462, %v1373, %v1486
    %v1511 = vsel %vm1463, %v1437, %v1487
    %v1512 = vpack.c.bf16 %v1491, %v1488
    %v1513 = vpack.c.bf16 %v1492, %v1489
    %v1514 = vpack.c.bf16 %v1493, %v1490
    %v1515 = vpack.c.bf16 %v1497, %v1494
    %v1516 = vpack.c.bf16 %v1498, %v1495
    %v1517 = vpack.c.bf16 %v1499, %v1496
    %v1518 = vpack.c.bf16 %v1503, %v1500
    %v1519 = vpack.c.bf16 %v1504, %v1501
    %v1520 = vpack.c.bf16 %v1505, %v1502
    %v1521 = vpack.c.bf16 %v1509, %v1506
    %v1522 = vpack.c.bf16 %v1510, %v1507
    %v1523 = vpack.c.bf16 %v1511, %v1508
    %v1524 = vld [vmem:[%s4] sm:$0xf]
    %v1525 = vld [vmem:[%s4 + $0x4] sm:$0xf]
    %v1526 = vld [vmem:[%s4 + $0x8] sm:$0xf]
    %v1527 = vld [vmem:[%s4 + $0xc] sm:$0xf]
    %1529 = vset.pattern.permute.xlu0 0
    %1530 = vperm.xlu0 %1529, %v1141
    %v1531 = vpop.permute.xlu0 %1530
    %1534 = vset.pattern.permute.xlu0 0
    %1535 = vperm.xlu0 %1534, %v1142
    %v1536 = vpop.permute.xlu0 %1535
    %1539 = vset.pattern.permute.xlu0 0
    %1540 = vperm.xlu0 %1539, %v1143
    %v1541 = vpop.permute.xlu0 %1540
    %1544 = vset.pattern.permute.xlu0 0
    %1545 = vperm.xlu0 %1544, %v1144
    %v1546 = vpop.permute.xlu0 %1545
    %v1552 = vunpack.c.l.b16 %v1524
    %v1553 = vunpack.c.l.b16 %v1525
    %v1554 = vunpack.c.l.b16 %v1526
    %v1555 = vunpack.c.l.b16 %v1527
    %v1556 = vpack.c.b16 %v1553, %v1552
    %v1557 = vpack.c.b16 %v1555, %v1554
    %v1559 = vsel %vm1217, %v1556, 0
    %v1562 = vsel %vm1217, %v1557, 0
    %1564 = vmatprep.subr.bf16.mxu0 %v1513
    %1565 = vmatpush1.bf16.msra.mxu0 %v1512
    %1566 = vmatprep.subr.bf16.mxu0 %v1516
    %1567 = vmatpush1.bf16.msra.mxu0 %v1515
    %1568 = vmatprep.subr.bf16.mxu0 %v1519
    %1569 = vmatpush1.bf16.msra.mxu0 %v1518
    %1570 = vmatprep.subr.bf16.mxu0 %v1522
    %1571 = vmatpush1.bf16.msra.mxu0 %v1521
    %1572 = vmatprep.subr.bf16.mxu0 0
    %1573 = vmatpush1.bf16.msra.mxu0 0
    %1574 = vmatprep.subr.bf16.mxu0 0
    %1575 = vmatpush1.bf16.msra.mxu0 0
    %1576 = vmatprep.subr.bf16.mxu0 0
    %1577 = vmatpush1.bf16.msra.mxu0 0
    %1578 = vmatprep.subr.bf16.mxu0 0
    %1579 = vmatpush1.bf16.msra.mxu0 0
    %1580 = vmatprep.subr.bf16.mxu0 0
    %1581 = vmatpush1.bf16.msra.mxu0 0
    %1582 = vmatprep.subr.bf16.mxu0 0
    %1583 = vmatpush1.bf16.msra.mxu0 0
    %1584 = vmatprep.subr.bf16.mxu0 0
    %1585 = vmatpush1.bf16.msra.mxu0 0
    %1586 = vmatprep.subr.bf16.mxu0 0
    %1587 = vmatpush1.bf16.msra.mxu0 0
    %1588 = vmatprep.subr.bf16.mxu0 0
    %1589 = vmatpush1.bf16.msra.mxu0 0
    %1590 = vmatprep.subr.bf16.mxu0 0
    %1591 = vmatpush1.bf16.msra.mxu0 0
    %1592 = vmatprep.subr.bf16.mxu0 0
    %1593 = vmatpush1.bf16.msra.mxu0 0
    %1594 = vmatprep.subr.bf16.mxu0 0
    %1595 = vmatpush1.bf16.msra.mxu0 0
    %1596 = vmatprep.mubr.bf16.mxu0 0
    %1597 = vmatmul.mubr.bf16.gmra.mrb[0].mxu0 %v1559
    %v1598 = vpop.f32.mrb[0].mxu0
    %v1599 = vadd.f32 %v1531, %v1598
    %v1600 = vpop.f32.mrb[0].mxu0
    %v1601 = vadd.f32 %v1531, %v1600
    %v1602 = vpop.f32.mrb[0].mxu0
    %v1603 = vadd.f32 %v1536, %v1602
    %v1604 = vpop.f32.mrb[0].mxu0
    %v1605 = vadd.f32 %v1536, %v1604
    %1606 = vmatprep.mubr.bf16.mxu0 0
    %1607 = vmatmul.mubr.bf16.gmra.mrb[0].mxu0 %v1562
    %v1608 = vpop.f32.mrb[0].mxu0
    %v1609 = vadd.f32 %v1541, %v1608
    %v1610 = vpop.f32.mrb[0].mxu0
    %v1611 = vadd.f32 %v1541, %v1610
    %v1612 = vpop.f32.mrb[0].mxu0
    %v1613 = vadd.f32 %v1546, %v1612
    %v1614 = vpop.f32.mrb[0].mxu0
    %v1615 = vadd.f32 %v1546, %v1614
    %1616 = vdwg.mxu0
    %1617 = vmatprep.subr.bf16.mxu0 0
    %1618 = vmatpush1.bf16.msra.mxu0 %v1514
    %1619 = vmatprep.subr.bf16.mxu0 0
    %1620 = vmatpush1.bf16.msra.mxu0 %v1517
    %1621 = vmatprep.subr.bf16.mxu0 0
    %1622 = vmatpush1.bf16.msra.mxu0 %v1520
    %1623 = vmatprep.subr.bf16.mxu0 0
    %1624 = vmatpush1.bf16.msra.mxu0 %v1523
    %1625 = vmatprep.subr.bf16.mxu0 0
    %1626 = vmatpush1.bf16.msra.mxu0 0
    %1627 = vmatprep.subr.bf16.mxu0 0
    %1628 = vmatpush1.bf16.msra.mxu0 0
    %1629 = vmatprep.subr.bf16.mxu0 0
    %1630 = vmatpush1.bf16.msra.mxu0 0
    %1631 = vmatprep.subr.bf16.mxu0 0
    %1632 = vmatpush1.bf16.msra.mxu0 0
    %1633 = vmatprep.subr.bf16.mxu0 0
    %1634 = vmatpush1.bf16.msra.mxu0 0
    %1635 = vmatprep.subr.bf16.mxu0 0
    %1636 = vmatpush1.bf16.msra.mxu0 0
    %1637 = vmatprep.subr.bf16.mxu0 0
    %1638 = vmatpush1.bf16.msra.mxu0 0
    %1639 = vmatprep.subr.bf16.mxu0 0
    %1640 = vmatpush1.bf16.msra.mxu0 0
    %1641 = vmatprep.subr.bf16.mxu0 0
    %1642 = vmatpush1.bf16.msra.mxu0 0
    %1643 = vmatprep.subr.bf16.mxu0 0
    %1644 = vmatpush1.bf16.msra.mxu0 0
    %1645 = vmatprep.subr.bf16.mxu0 0
    %1646 = vmatpush1.bf16.msra.mxu0 0
    %1647 = vmatprep.subr.bf16.mxu0 0
    %1648 = vmatpush1.bf16.msra.mxu0 0
    %1649 = vmatprep.mubr.bf16.mxu0 0
    %1650 = vmatmul.mubr.bf16.gmra.mrb[0].mxu0 %v1559
    %v1651 = vpop.f32.mrb[0].mxu0
    %v1652 = vadd.f32 %v1531, %v1651
    %v1653 = vpop.f32.mrb[0].mxu0
    %v1654 = vpop.f32.mrb[0].mxu0
    %v1655 = vadd.f32 %v1536, %v1654
    %v1656 = vpop.f32.mrb[0].mxu0
    %1657 = vmatprep.mubr.bf16.mxu0 0
    %1658 = vmatmul.mubr.bf16.gmra.mrb[0].mxu0 %v1562
    %v1659 = vpop.f32.mrb[0].mxu0
    %v1660 = vadd.f32 %v1541, %v1659
    %v1661 = vpop.f32.mrb[0].mxu0
    %v1662 = vpop.f32.mrb[0].mxu0
    %v1663 = vadd.f32 %v1546, %v1662
    %v1664 = vpop.f32.mrb[0].mxu0
    %1665 = vdwg.mxu0
    %vm1666 = vcmp.gt.f32.partialorder %v1599, 0.0
    %vm1667 = vcmp.gt.f32.partialorder %v1601, 0.0
    %vm1668 = vcmp.gt.f32.partialorder %v1652, 0.0
    %vm1669 = vcmp.gt.f32.partialorder %v1603, 0.0
    %vm1670 = vcmp.gt.f32.partialorder %v1605, 0.0
    %vm1671 = vcmp.gt.f32.partialorder %v1655, 0.0
    %vm1672 = vcmp.gt.f32.partialorder %v1609, 0.0
    %vm1673 = vcmp.gt.f32.partialorder %v1611, 0.0
    %vm1674 = vcmp.gt.f32.partialorder %v1660, 0.0
    %vm1675 = vcmp.gt.f32.partialorder %v1613, 0.0
    %vm1676 = vcmp.gt.f32.partialorder %v1615, 0.0
    %vm1677 = vcmp.gt.f32.partialorder %v1663, 0.0
    %v1678 = vmul.f32 %v1599, 0.01
    %v1679 = vmul.f32 %v1601, 0.01
    %v1680 = vmul.f32 %v1652, 0.01
    %v1681 = vmul.f32 %v1603, 0.01
    %v1682 = vmul.f32 %v1605, 0.01
    %v1683 = vmul.f32 %v1655, 0.01
    %v1684 = vmul.f32 %v1609, 0.01
    %v1685 = vmul.f32 %v1611, 0.01
    %v1686 = vmul.f32 %v1660, 0.01
    %v1687 = vmul.f32 %v1613, 0.01
    %v1688 = vmul.f32 %v1615, 0.01
    %v1689 = vmul.f32 %v1663, 0.01
    %v1690 = vsel %vm1666, %v1599, %v1678
    %v1691 = vsel %vm1667, %v1601, %v1679
    %v1692 = vsel %vm1668, %v1652, %v1680
    %v1693 = vsel %vm1669, %v1603, %v1681
    %v1694 = vsel %vm1670, %v1605, %v1682
    %v1695 = vsel %vm1671, %v1655, %v1683
    %v1696 = vsel %vm1672, %v1609, %v1684
    %v1697 = vsel %vm1673, %v1611, %v1685
    %v1698 = vsel %vm1674, %v1660, %v1686
    %v1699 = vsel %vm1675, %v1613, %v1687
    %v1700 = vsel %vm1676, %v1615, %v1688
    %v1701 = vsel %vm1677, %v1663, %v1689
    %v1702 = vpack.c.bf16 %v1693, %v1690
    %v1703 = vpack.c.bf16 %v1694, %v1691
    %v1704 = vpack.c.bf16 %v1695, %v1692
    %v1705 = vpack.c.bf16 %v1699, %v1696
    %v1706 = vpack.c.bf16 %v1700, %v1697
    %v1707 = vpack.c.bf16 %v1701, %v1698
    %v1708 = vld [vmem:[%s5] sm:$0xf]
    %v1709 = vld [vmem:[%s5 + $0x4] sm:$0xf]
    %v1710 = vld [vmem:[%s5 + $0x8] sm:$0xf]
    %v1711 = vld [vmem:[%s5 + $0xc] sm:$0xf]
    %1713 = vset.pattern.permute.xlu0 0
    %1714 = vperm.xlu0 %1713, %v1145
    %v1715 = vpop.permute.xlu0 %1714
    %1718 = vset.pattern.permute.xlu0 0
    %1719 = vperm.xlu0 %1718, %v1146
    %v1720 = vpop.permute.xlu0 %1719
    %1723 = vset.pattern.permute.xlu0 0
    %1724 = vperm.xlu0 %1723, %v1147
    %v1725 = vpop.permute.xlu0 %1724
    %1728 = vset.pattern.permute.xlu0 0
    %1729 = vperm.xlu0 %1728, %v1148
    %v1730 = vpop.permute.xlu0 %1729
    %v1736 = vunpack.c.l.b16 %v1708
    %v1737 = vunpack.c.l.b16 %v1709
    %v1738 = vunpack.c.l.b16 %v1710
    %v1739 = vunpack.c.l.b16 %v1711
    %v1740 = vpack.c.b16 %v1737, %v1736
    %v1741 = vpack.c.b16 %v1739, %v1738
    %vm1742 = vcmask 261120
    %v1744 = vsel %vm1742, %v1740, 0
    %v1747 = vsel %vm1742, %v1741, 0
    %1749 = vmatprep.subr.bf16.mxu0 %v1703
    %1750 = vmatpush1.bf16.msra.mxu0 %v1702
    %1751 = vmatprep.subr.bf16.mxu0 %v1706
    %1752 = vmatpush1.bf16.msra.mxu0 %v1705
    %1753 = vmatprep.subr.bf16.mxu0 0
    %1754 = vmatpush1.bf16.msra.mxu0 0
    %1755 = vmatprep.subr.bf16.mxu0 0
    %1756 = vmatpush1.bf16.msra.mxu0 0
    %1757 = vmatprep.subr.bf16.mxu0 0
    %1758 = vmatpush1.bf16.msra.mxu0 0
    %1759 = vmatprep.subr.bf16.mxu0 0
    %1760 = vmatpush1.bf16.msra.mxu0 0
    %1761 = vmatprep.subr.bf16.mxu0 0
    %1762 = vmatpush1.bf16.msra.mxu0 0
    %1763 = vmatprep.subr.bf16.mxu0 0
    %1764 = vmatpush1.bf16.msra.mxu0 0
    %1765 = vmatprep.subr.bf16.mxu0 0
    %1766 = vmatpush1.bf16.msra.mxu0 0
    %1767 = vmatprep.subr.bf16.mxu0 0
    %1768 = vmatpush1.bf16.msra.mxu0 0
    %1769 = vmatprep.subr.bf16.mxu0 0
    %1770 = vmatpush1.bf16.msra.mxu0 0
    %1771 = vmatprep.subr.bf16.mxu0 0
    %1772 = vmatpush1.bf16.msra.mxu0 0
    %1773 = vmatprep.subr.bf16.mxu0 0
    %1774 = vmatpush1.bf16.msra.mxu0 0
    %1775 = vmatprep.subr.bf16.mxu0 0
    %1776 = vmatpush1.bf16.msra.mxu0 0
    %1777 = vmatprep.subr.bf16.mxu0 0
    %1778 = vmatpush1.bf16.msra.mxu0 0
    %1779 = vmatprep.subr.bf16.mxu0 0
    %1780 = vmatpush1.bf16.msra.mxu0 0
    %1781 = vmatprep.mubr.bf16.mxu0 0
    %1782 = vmatmul.mubr.bf16.gmra.mrb[0].mxu0 %v1744
    %v1783 = vpop.f32.mrb[0].mxu0
    %v1784 = vadd.f32 %v1715, %v1783
    %v1785 = vpop.f32.mrb[0].mxu0
    %v1786 = vadd.f32 %v1715, %v1785
    %v1787 = vpop.f32.mrb[0].mxu0
    %v1788 = vadd.f32 %v1720, %v1787
    %v1789 = vpop.f32.mrb[0].mxu0
    %v1790 = vadd.f32 %v1720, %v1789
    %1791 = vmatprep.mubr.bf16.mxu0 0
    %1792 = vmatmul.mubr.bf16.gmra.mrb[0].mxu0 %v1747
    %v1793 = vpop.f32.mrb[0].mxu0
    %v1794 = vadd.f32 %v1725, %v1793
    %v1795 = vpop.f32.mrb[0].mxu0
    %v1796 = vadd.f32 %v1725, %v1795
    %v1797 = vpop.f32.mrb[0].mxu0
    %v1798 = vadd.f32 %v1730, %v1797
    %v1799 = vpop.f32.mrb[0].mxu0
    %v1800 = vadd.f32 %v1730, %v1799
    %1801 = vdwg.mxu0
    %1802 = vmatprep.subr.bf16.mxu0 0
    %1803 = vmatpush1.bf16.msra.mxu0 %v1704
    %1804 = vmatprep.subr.bf16.mxu0 0
    %1805 = vmatpush1.bf16.msra.mxu0 %v1707
    %1806 = vmatprep.subr.bf16.mxu0 0
    %1807 = vmatpush1.bf16.msra.mxu0 0
    %1808 = vmatprep.subr.bf16.mxu0 0
    %1809 = vmatpush1.bf16.msra.mxu0 0
    %1810 = vmatprep.subr.bf16.mxu0 0
    %1811 = vmatpush1.bf16.msra.mxu0 0
    %1812 = vmatprep.subr.bf16.mxu0 0
    %1813 = vmatpush1.bf16.msra.mxu0 0
    %1814 = vmatprep.subr.bf16.mxu0 0
    %1815 = vmatpush1.bf16.msra.mxu0 0
    %1816 = vmatprep.subr.bf16.mxu0 0
    %1817 = vmatpush1.bf16.msra.mxu0 0
    %1818 = vmatprep.subr.bf16.mxu0 0
    %1819 = vmatpush1.bf16.msra.mxu0 0
    %1820 = vmatprep.subr.bf16.mxu0 0
    %1821 = vmatpush1.bf16.msra.mxu0 0
    %1822 = vmatprep.subr.bf16.mxu0 0
    %1823 = vmatpush1.bf16.msra.mxu0 0
    %1824 = vmatprep.subr.bf16.mxu0 0
    %1825 = vmatpush1.bf16.msra.mxu0 0
    %1826 = vmatprep.subr.bf16.mxu0 0
    %1827 = vmatpush1.bf16.msra.mxu0 0
    %1828 = vmatprep.subr.bf16.mxu0 0
    %1829 = vmatpush1.bf16.msra.mxu0 0
    %1830 = vmatprep.subr.bf16.mxu0 0
    %1831 = vmatpush1.bf16.msra.mxu0 0
    %1832 = vmatprep.subr.bf16.mxu0 0
    %1833 = vmatpush1.bf16.msra.mxu0 0
    %1834 = vmatprep.mubr.bf16.mxu0 0
    %1835 = vmatmul.mubr.bf16.gmra.mrb[0].mxu0 %v1744
    %v1836 = vpop.f32.mrb[0].mxu0
    %v1837 = vadd.f32 %v1715, %v1836
    %v1838 = vpop.f32.mrb[0].mxu0
    %v1839 = vpop.f32.mrb[0].mxu0
    %v1840 = vadd.f32 %v1720, %v1839
    %v1841 = vpop.f32.mrb[0].mxu0
    %1842 = vmatprep.mubr.bf16.mxu0 0
    %1843 = vmatmul.mubr.bf16.gmra.mrb[0].mxu0 %v1747
    %v1844 = vpop.f32.mrb[0].mxu0
    %v1845 = vadd.f32 %v1725, %v1844
    %v1846 = vpop.f32.mrb[0].mxu0
    %v1847 = vpop.f32.mrb[0].mxu0
    %v1848 = vadd.f32 %v1730, %v1847
    %v1849 = vpop.f32.mrb[0].mxu0
    %1850 = vdwg.mxu0
    %vm1851 = vcmp.gt.f32.partialorder %v1784, 0.0
    %vm1852 = vcmp.gt.f32.partialorder %v1786, 0.0
    %vm1853 = vcmp.gt.f32.partialorder %v1837, 0.0
    %vm1854 = vcmp.gt.f32.partialorder %v1788, 0.0
    %vm1855 = vcmp.gt.f32.partialorder %v1790, 0.0
    %vm1856 = vcmp.gt.f32.partialorder %v1840, 0.0
    %vm1857 = vcmp.gt.f32.partialorder %v1794, 0.0
    %vm1858 = vcmp.gt.f32.partialorder %v1796, 0.0
    %vm1859 = vcmp.gt.f32.partialorder %v1845, 0.0
    %vm1860 = vcmp.gt.f32.partialorder %v1798, 0.0
    %vm1861 = vcmp.gt.f32.partialorder %v1800, 0.0
    %vm1862 = vcmp.gt.f32.partialorder %v1848, 0.0
    %v1863 = vmul.f32 %v1784, 0.01
    %v1864 = vmul.f32 %v1786, 0.01
    %v1865 = vmul.f32 %v1837, 0.01
    %v1866 = vmul.f32 %v1788, 0.01
    %v1867 = vmul.f32 %v1790, 0.01
    %v1868 = vmul.f32 %v1840, 0.01
    %v1869 = vmul.f32 %v1794, 0.01
    %v1870 = vmul.f32 %v1796, 0.01
    %v1871 = vmul.f32 %v1845, 0.01
    %v1872 = vmul.f32 %v1798, 0.01
    %v1873 = vmul.f32 %v1800, 0.01
    %v1874 = vmul.f32 %v1848, 0.01
    %v1875 = vsel %vm1851, %v1784, %v1863
    %v1876 = vsel %vm1852, %v1786, %v1864
    %v1877 = vsel %vm1853, %v1837, %v1865
    %v1878 = vsel %vm1854, %v1788, %v1866
    %v1879 = vsel %vm1855, %v1790, %v1867
    %v1880 = vsel %vm1856, %v1840, %v1868
    %v1881 = vsel %vm1857, %v1794, %v1869
    %v1882 = vsel %vm1858, %v1796, %v1870
    %v1883 = vsel %vm1859, %v1845, %v1871
    %v1884 = vsel %vm1860, %v1798, %v1872
    %v1885 = vsel %vm1861, %v1800, %v1873
    %v1886 = vsel %vm1862, %v1848, %v1874
    %v1887 = vpack.c.bf16 %v1878, %v1875
    %v1888 = vpack.c.bf16 %v1879, %v1876
    %v1889 = vpack.c.bf16 %v1880, %v1877
    %v1890 = vpack.c.bf16 %v1884, %v1881
    %v1891 = vpack.c.bf16 %v1885, %v1882
    %v1892 = vpack.c.bf16 %v1886, %v1883
    %v1893 = vld [vmem:[%s7] sm:$0x1]
    %s1894 = sld [smem:[#allocation2]]
    %v1895 = vstv %s1894
    %v1897 = vsel %vm1742, %v1893, 0
    %1899 = vmatprep.subr.bf16.mxu0 %v1888
    %1900 = vmatpush1.bf16.msra.mxu0 %v1887
    %1901 = vmatprep.subr.bf16.mxu0 %v1891
    %1902 = vmatpush1.bf16.msra.mxu0 %v1890
    %1903 = vmatprep.subr.bf16.mxu0 0
    %1904 = vmatpush1.bf16.msra.mxu0 0
    %1905 = vmatprep.subr.bf16.mxu0 0
    %1906 = vmatpush1.bf16.msra.mxu0 0
    %1907 = vmatprep.subr.bf16.mxu0 0
    %1908 = vmatpush1.bf16.msra.mxu0 0
    %1909 = vmatprep.subr.bf16.mxu0 0
    %1910 = vmatpush1.bf16.msra.mxu0 0
    %1911 = vmatprep.subr.bf16.mxu0 0
    %1912 = vmatpush1.bf16.msra.mxu0 0
    %1913 = vmatprep.subr.bf16.mxu0 0
    %1914 = vmatpush1.bf16.msra.mxu0 0
    %1915 = vmatprep.subr.bf16.mxu0 0
    %1916 = vmatpush1.bf16.msra.mxu0 0
    %1917 = vmatprep.subr.bf16.mxu0 0
    %1918 = vmatpush1.bf16.msra.mxu0 0
    %1919 = vmatprep.subr.bf16.mxu0 0
    %1920 = vmatpush1.bf16.msra.mxu0 0
    %1921 = vmatprep.subr.bf16.mxu0 0
    %1922 = vmatpush1.bf16.msra.mxu0 0
    %1923 = vmatprep.subr.bf16.mxu0 0
    %1924 = vmatpush1.bf16.msra.mxu0 0
    %1925 = vmatprep.subr.bf16.mxu0 0
    %1926 = vmatpush1.bf16.msra.mxu0 0
    %1927 = vmatprep.subr.bf16.mxu0 0
    %1928 = vmatpush1.bf16.msra.mxu0 0
    %1929 = vmatprep.subr.bf16.mxu0 0
    %1930 = vmatpush1.bf16.msra.mxu0 0
    %1931 = vmatprep.mubr.bf16.mxu0 0
    %1932 = vmatmul.mubr.bf16.gmra.mrb[0].mxu0 %v1897
    %v1933 = vpop.f32.mrb[0].mxu0
    %v1934 = vadd.f32 %v1895, %v1933
    %v1935 = vpop.f32.mrb[0].mxu0
    %v1936 = vadd.f32 %v1895, %v1935
    %v1937 = vpop.f32.mrb[0].mxu0
    %v1938 = vpop.f32.mrb[0].mxu0
    %1939 = vdwg.mxu0
    %1940 = vmatprep.subr.bf16.mxu0 0
    %1941 = vmatpush1.bf16.msra.mxu0 %v1889
    %1942 = vmatprep.subr.bf16.mxu0 0
    %1943 = vmatpush1.bf16.msra.mxu0 %v1892
    %1944 = vmatprep.subr.bf16.mxu0 0
    %1945 = vmatpush1.bf16.msra.mxu0 0
    %1946 = vmatprep.subr.bf16.mxu0 0
    %1947 = vmatpush1.bf16.msra.mxu0 0
    %1948 = vmatprep.subr.bf16.mxu0 0
    %1949 = vmatpush1.bf16.msra.mxu0 0
    %1950 = vmatprep.subr.bf16.mxu0 0
    %1951 = vmatpush1.bf16.msra.mxu0 0
    %1952 = vmatprep.subr.bf16.mxu0 0
    %1953 = vmatpush1.bf16.msra.mxu0 0
    %1954 = vmatprep.subr.bf16.mxu0 0
    %1955 = vmatpush1.bf16.msra.mxu0 0
    %1956 = vmatprep.subr.bf16.mxu0 0
    %1957 = vmatpush1.bf16.msra.mxu0 0
    %1958 = vmatprep.subr.bf16.mxu0 0
    %1959 = vmatpush1.bf16.msra.mxu0 0
    %1960 = vmatprep.subr.bf16.mxu0 0
    %1961 = vmatpush1.bf16.msra.mxu0 0
    %1962 = vmatprep.subr.bf16.mxu0 0
    %1963 = vmatpush1.bf16.msra.mxu0 0
    %1964 = vmatprep.subr.bf16.mxu0 0
    %1965 = vmatpush1.bf16.msra.mxu0 0
    %1966 = vmatprep.subr.bf16.mxu0 0
    %1967 = vmatpush1.bf16.msra.mxu0 0
    %1968 = vmatprep.subr.bf16.mxu0 0
    %1969 = vmatpush1.bf16.msra.mxu0 0
    %1970 = vmatprep.subr.bf16.mxu0 0
    %1971 = vmatpush1.bf16.msra.mxu0 0
    %1972 = vmatprep.mubr.bf16.mxu0 0
    %1973 = vmatmul.mubr.bf16.gmra.mrb[0].mxu0 %v1897
    %v1974 = vpop.f32.mrb[0].mxu0
    %v1975 = vadd.f32 %v1895, %v1974
    %v1976 = vpop.f32.mrb[0].mxu0
    %v1977 = vpop.f32.mrb[0].mxu0
    %v1978 = vpop.f32.mrb[0].mxu0
    %1979 = vdwg.mxu0
    %v1983 = vcombine.low %v1934, %v1936
    %v1985 = vunpack.c.l.s4 1966171168
    %v1986 = vunpack.c.0.s8 %v1985
    %v1987 = vlaneseq
    %v1988 = vshrl.u32 %v1987, 7
    %v1989 = vsub.s32 %v1986, %v1988
    %v1990 = vrot.slane %v1983, %v1989
    %v1992 = vunpack.c.l.s4 1966171168
    %v1993 = vunpack.c.0.s8 %v1992
    %v1994 = vlaneseq
    %v1995 = vshrl.u32 %v1994, 7
    %v1996 = vsub.s32 %v1993, %v1995
    %v1997 = vrot.slane %v1975, %v1996
    %v1998 = vcombine.low %v1990, %v1997
    %v2000 = vunpack.c.l.s4 1966171168
    %v2001 = vunpack.c.0.s8 %v2000
    %v2002 = vlaneseq
    %v2003 = vshrl.u32 %v2002, 7
    %v2004 = vsub.s32 %v2001, %v2003
    %v2005 = vrot.slane %v1998, %v2004
    %v2007 = vlaneseq
    %vm2008 = vcmp.ge.s32.totalorder %v2007, 0
    %vm2009 = vcmp.lt.s32.totalorder %v2007, 384
    %vm2010 = vmand %vm2008, %vm2009
    %2011 = vst.msk [vmem:[#allocation3] sm:$0x7] %vm2010, %v2005
    // Predicated region
    $region38: #{tpu_custom_call.1} parent=1 // pred_check
      _
    $region39: #{tpu_custom_call.1} parent=1 // pred_check_branch
      %2013 = sbr.rel (0) target = $region41
    $region40: #{tpu_custom_call.1} parent=1 // pred_region
      %s2015 = ssub.s32 48, 48
      %2016 = vsyncadd [#allocation4], %s2015
      %s2018 = sshll.u32 [#allocation3], 4
      %s2019 = int_to_ptr.vmem [resolvable:$true] %s2018
      %2021 = dma.vmem_to_hbm [thread:$0]  %s2019, 48, %s9, [#allocation4]
    $region41: #{tpu_custom_call.1} parent=1 // pred_fallthru
      _
    // Predicated region
    $region42: #{tpu_custom_call.1} parent=1 // pred_check
      _
    $region43: #{tpu_custom_call.1} parent=1 // pred_check_branch
      %2023 = sbr.rel (0) target = $region45
    $region44: #{tpu_custom_call.1} parent=1 // pred_region
      %2024 = dma.done [#allocation4], 48
    $region45: #{tpu_custom_call.1} parent=1 // pred_fallthru
      _
    %2025 = vsyncpa [#allocation4], 1

</llo_original>
